<compile_context>
chip_gen: v5e
topology: v5e:2x2
jax: 0.10.0
libtpu: 0.0.40
codegen_flags: <defaults>
</compile_context>

<pallas_src>
import functools
import math

import jax
import jax.numpy as jnp
from jax.experimental import pallas as pl
from jax.experimental.pallas import tpu as pltpu


# ----------------------------------------------------------------------------
# Pallas kernels
# ----------------------------------------------------------------------------
def _layernorm_kernel(x_ref, g_ref, b_ref, o_ref, *, eps):
    x = x_ref[...]
    mu = jnp.mean(x, axis=-1, keepdims=True)
    var = jnp.mean(jnp.square(x - mu), axis=-1, keepdims=True)
    o_ref[...] = (x - mu) * jax.lax.rsqrt(var + eps) * g_ref[...] + b_ref[...]


def layernorm(x, g, b, eps=1e-5, *, block_rows=None):
    """LayerNorm over last dim; x:[M,H], row-tiled with a parallel grid axis."""
    M, H = x.shape
    if block_rows is None or M % block_rows != 0:
        block_rows = M
    grid = (M // block_rows,)
    return pl.pallas_call(
        functools.partial(_layernorm_kernel, eps=eps),
        out_shape=jax.ShapeDtypeStruct((M, H), jnp.float32),
        grid=grid,
        in_specs=[
            pl.BlockSpec((block_rows, H), lambda i: (i, 0)),
            pl.BlockSpec((1, H), lambda i: (0, 0)),
            pl.BlockSpec((1, H), lambda i: (0, 0)),
        ],
        out_specs=pl.BlockSpec((block_rows, H), lambda i: (i, 0)),
        compiler_params=pltpu.CompilerParams(
            dimension_semantics=("parallel",),
            vmem_limit_bytes=32 * 1024 * 1024,
        ),
    )(x, g.reshape(1, H), b.reshape(1, H))


def _encoder_layer_kernel(x_ref, bias_ref, wqkv_ref, bqkv_ref, wo_ref, bo_ref,
                          ln1g_ref, ln1b_ref, w1_ref, b1_ref, w2_ref, b2_ref,
                          ln2g_ref, ln2b_ref, o_ref, *, nH, eps):
    # One grid step == one batch element: x_ref is [S, H].
    S, H = x_ref.shape
    Dh = H // nH

    x = x_ref[...]                                               # [S, H] f32
    xb = x.astype(jnp.bfloat16)

    # ---- fused QKV projection: single bf16 MXU pass, K=H, N=3H.
    #      (1/sqrt(Dh) is pre-folded into the Q columns of wqkv at init.) ----
    qkv = jnp.dot(xb, wqkv_ref[...], preferred_element_type=jnp.float32)
    qkv = qkv + bqkv_ref[...]                                    # [S, 3H] f32
    q2d, k2d, v2d = qkv[:, 0:H], qkv[:, H:2 * H], qkv[:, 2 * H:3 * H]

    def split_heads(t):
        # [S, H] -> [nH, S, Dh]; layout plumbing only (lane slices stacked on a
        # new leading batch axis), all GEMM/softmax work stays head-batched.
        return jnp.stack([t[:, h * Dh:(h + 1) * Dh] for h in range(nH)], axis=0)

    qh = split_heads(q2d).astype(jnp.bfloat16)                   # [nH, S, Dh]
    kh = split_heads(k2d).astype(jnp.bfloat16)
    vh = split_heads(v2d).astype(jnp.bfloat16)

    # ---- attention, batched over all heads; scores/softmax in f32 ----
    bias = bias_ref[0]                                           # [1, S] additive mask
    s = jnp.einsum("hqd,hkd->hqk", qh, kh,
                   preferred_element_type=jnp.float32) + bias    # [nH, S, S]
    m = jnp.max(s, axis=-1, keepdims=True)
    p = jnp.exp(s - m)
    p = p * pl.reciprocal(jnp.sum(p, axis=-1, keepdims=True), approx=True)
    o = jnp.einsum("hqk,hkd->hqd", p.astype(jnp.bfloat16), vh,
                   preferred_element_type=jnp.float32)           # [nH, S, Dh]

    # merge heads back into contiguous lane slices -> ONE K=H O-projection GEMM
    o = jnp.concatenate([o[h] for h in range(nH)], axis=-1)      # [S, H]
    attn = jnp.dot(o.astype(jnp.bfloat16), wo_ref[...],
                   preferred_element_type=jnp.float32) + bo_ref[...]

    def ln(t, g, b):
        mu = jnp.mean(t, axis=-1, keepdims=True)
        var = jnp.mean(jnp.square(t - mu), axis=-1, keepdims=True)
        return (t - mu) * jax.lax.rsqrt(var + eps) * g + b

    # ---- residual + LN1 (fused) ----
    h1 = ln(x + attn, ln1g_ref[...], ln1b_ref[...])

    # ---- FFN (bf16 MXU, f32 accumulate) ----
    f = jnp.dot(h1.astype(jnp.bfloat16), w1_ref[...],
                preferred_element_type=jnp.float32) + b1_ref[...]
    # TODO(synk): HF RoBERTa default intermediate activation is exact (erf) GELU;
    # tanh approximation used here for guaranteed Mosaic lowering.
    f = jax.nn.gelu(f, approximate=True)
    f = jnp.dot(f.astype(jnp.bfloat16), w2_ref[...],
                preferred_element_type=jnp.float32) + b2_ref[...]

    # ---- residual + LN2 (fused) ----
    o_ref[...] = ln(h1 + f, ln2g_ref[...], ln2b_ref[...])


def encoder_layer(x, bias, lyr, *, B, S, nH, eps=1e-5):
    """One full transformer encoder layer as a single pallas_call.

    x:[B*S,H] f32, bias:[B,1,S] additive attention mask -> [B*S,H] f32.
    Grid is over the batch axis (parallel -> both v7x TensorCores); weights use
    constant index_maps so they are DMA'd once and stay resident in VMEM.
    """
    M, H = x.shape
    F = lyr["w1"].shape[1]
    kernel = functools.partial(_encoder_layer_kernel, nH=nH, eps=eps)

    def wspec(shape):
        return pl.BlockSpec(shape, lambda b: (0,) * len(shape))

    bytes_weights = 2 * (H * 3 * H + H * H + H * F + F * H)       # bf16 weights
    bytes_small = 4 * (3 * H + H + F + H + 4 * H)                 # f32 biases / LN
    cost = pl.CostEstimate(
        flops=(2 * M * H * 3 * H) + (4 * B * S * S * H) + (2 * M * H * H)
              + (4 * M * H * F),
        transcendentals=B * nH * S * S + M * F,
        bytes_accessed=2 * M * H * 4 + B * S * 4 + bytes_weights + bytes_small,
    )

    return pl.pallas_call(
        kernel,
        out_shape=jax.ShapeDtypeStruct((M, H), jnp.float32),
        grid=(B,),
        in_specs=[
            pl.BlockSpec((S, H), lambda b: (b, 0)),      # x tile (one batch element)
            pl.BlockSpec((1, 1, S), lambda b: (b, 0, 0)),  # attention bias
            wspec((H, 3 * H)),     # wqkv (bf16)
            wspec((1, 3 * H)),     # bqkv (f32)
            wspec((H, H)),         # wo   (bf16)
            wspec((1, H)),         # bo
            wspec((1, H)),         # ln1_g
            wspec((1, H)),         # ln1_b
            wspec((H, F)),         # w1   (bf16)
            wspec((1, F)),         # b1
            wspec((F, H)),         # w2   (bf16)
            wspec((1, H)),         # b2
            wspec((1, H)),         # ln2_g
            wspec((1, H)),         # ln2_b
        ],
        out_specs=pl.BlockSpec((S, H), lambda b: (b, 0)),
        compiler_params=pltpu.CompilerParams(
            dimension_semantics=("parallel",),
            vmem_limit_bytes=32 * 1024 * 1024,
        ),
        cost_estimate=cost,
    )(x, bias, lyr["wqkv"], lyr["bqkv"].reshape(1, -1), lyr["wo"],
      lyr["bo"].reshape(1, -1), lyr["ln1_g"].reshape(1, -1),
      lyr["ln1_b"].reshape(1, -1), lyr["w1"], lyr["b1"].reshape(1, -1),
      lyr["w2"], lyr["b2"].reshape(1, -1), lyr["ln2_g"].reshape(1, -1),
      lyr["ln2_b"].reshape(1, -1))


def _dnn_kernel(x_ref, w1_ref, b1_ref, w2_ref, b2_ref, w3_ref, b3_ref, o_ref):
    h = jnp.dot(x_ref[...].astype(jnp.bfloat16), w1_ref[...],
                preferred_element_type=jnp.float32) + b1_ref[...]
    h = jnp.maximum(h, 0.0)
    h = jnp.dot(h.astype(jnp.bfloat16), w2_ref[...],
                preferred_element_type=jnp.float32) + b2_ref[...]
    h = jnp.maximum(h, 0.0)
    o_ref[...] = jnp.dot(h.astype(jnp.bfloat16), w3_ref[...],
                         preferred_element_type=jnp.float32) + b3_ref[...]


def dnn_forward(params, inputs):
    """Fused 3-layer MLP head (dropout is identity in eval mode)."""
    M, D = inputs.shape
    Dh1 = params["d_w1"].shape[1]
    Dh2 = params["d_w2"].shape[1]
    n_out = params["d_w3"].shape[1]

    def full(shape):
        return pl.BlockSpec(shape, lambda i: (0,) * len(shape))

    return pl.pallas_call(
        _dnn_kernel,
        out_shape=jax.ShapeDtypeStruct((M, n_out), jnp.float32),
        grid=(1,),
        in_specs=[
            full((M, D)),
            full((D, Dh1)), full((1, Dh1)),
            full((Dh1, Dh2)), full((1, Dh2)),
            full((Dh2, n_out)), full((1, n_out)),
        ],
        out_specs=full((M, n_out)),
        compiler_params=pltpu.CompilerParams(
            dimension_semantics=("arbitrary",),
            vmem_limit_bytes=32 * 1024 * 1024,
        ),
    )(inputs, params["d_w1"], params["d_b1"].reshape(1, -1),
      params["d_w2"], params["d_b2"].reshape(1, -1),
      params["d_w3"], params["d_b3"].reshape(1, -1))


# ----------------------------------------------------------------------------
# Model (parameters + forward)
# ----------------------------------------------------------------------------
def init_params(key, *, vocab=64, max_pos=32, H=32, F=64, n_layers=2,
                num_heads=2, n_extra=4, dnn_hidden=32, n_out=2):
    ks = iter(jax.random.split(key, 128))

    def nrm(shape, scale=0.02, dtype=jnp.bfloat16):
        return (scale * jax.random.normal(next(ks), shape)).astype(dtype)

    params = {
        "word_emb": nrm((vocab, H), dtype=jnp.float32),
        "pos_emb": nrm((max_pos, H), dtype=jnp.float32),
        "emb_ln_g": jnp.ones((H,), jnp.float32),
        "emb_ln_b": jnp.zeros((H,), jnp.float32),
        "layers": [],
    }
    scale = 1.0 / math.sqrt(H // num_heads)
    for _ in range(n_layers):
        # fused QKV projection (concatenated wq|wk|wv); the 1/sqrt(Dh) attention
        # scale is folded into the Q columns (bqkv is zero-init, so no bias fold
        # needed; if nonzero its Q slice would be scaled identically).
        wqkv = (0.02 * jax.random.normal(next(ks), (H, 3 * H))).at[:, :H].multiply(scale)
        params["layers"].append({
            "wqkv": wqkv.astype(jnp.bfloat16),
            "bqkv": jnp.zeros((3 * H,), jnp.float32),
            "wo": nrm((H, H)), "bo": jnp.zeros((H,), jnp.float32),
            "ln1_g": jnp.ones((H,), jnp.float32),
            "ln1_b": jnp.zeros((H,), jnp.float32),
            "w1": nrm((H, F)), "b1": jnp.zeros((F,), jnp.float32),
            "w2": nrm((F, H)), "b2": jnp.zeros((H,), jnp.float32),
            "ln2_g": jnp.ones((H,), jnp.float32),
            "ln2_b": jnp.zeros((H,), jnp.float32),
        })
    d_in = H + 1 + n_extra  # [CLS] | exposure_duration | one_hot
    # TODO(synk): DNN_module internals are not given; use a 2-hidden-layer
    # ReLU MLP (dropout is identity in eval mode).
    params["d_w1"] = nrm((d_in, dnn_hidden))
    params["d_b1"] = jnp.zeros((dnn_hidden,), jnp.float32)
    params["d_w2"] = nrm((dnn_hidden, dnn_hidden))
    params["d_b2"] = jnp.zeros((dnn_hidden,), jnp.float32)
    params["d_w3"] = nrm((dnn_hidden, n_out))
    params["d_b3"] = jnp.zeros((n_out,), jnp.float32)
    return params


def roberta_forward(params, sent_id, mask, *, num_heads):
    B, S = sent_id.shape
    H = params["word_emb"].shape[1]

    # embeddings (gather is XLA glue) + layernorm kernel.
    # RoBERTa position ids start at padding_idx + 1 = 2.
    pos_ids = jnp.arange(S) + 2
    x = params["word_emb"][sent_id] + params["pos_emb"][pos_ids][None]
    x = layernorm(x.reshape(B * S, H), params["emb_ln_g"], params["emb_ln_b"],
                  block_rows=S)

    # additive attention mask: [B, 1, S] (0 for valid tokens, -1e9 for padding)
    bias = jnp.where(mask > 0, 0.0, -1e9).astype(jnp.float32)[:, None, :]

    for lyr in params["layers"]:
        x = encoder_layer(x, bias, lyr, B=B, S=S, nH=num_heads)
    return x.reshape(B, S, H)  # last hidden state, i.e. roberta(...)[0]


def trident_forward(params, sent_id, mask, exposure_duration, one_hot_encoding,
                    *, num_heads):
    hidden = roberta_forward(params, sent_id, mask, num_heads=num_heads)  # [B,S,H]
    roberta_output = hidden[:, 0, :]                                      # [B, H]
    # torch.cat((cls, torch.t(exposure.unsqueeze(0)), one_hot), 1)
    inputs = jnp.concatenate(
        [roberta_output, exposure_duration[:, None], one_hot_encoding], axis=1
    )
    out = dnn_forward(params, inputs)
    return out, roberta_output


# ----------------------------------------------------------------------------
# Main
# ----------------------------------------------------------------------------
if __name__ == "__main__":
    B, S, H, NH, VOCAB, N_EXTRA = 2, 8, 32, 2, 64, 4

    root = jax.random.PRNGKey(0)
    k_par, k_ids, k_exp = jax.random.split(root, 3)

    params = init_params(k_par, vocab=VOCAB, H=H, num_heads=NH, n_extra=N_EXTRA)

    sent_id = jax.random.randint(k_ids, (B, S), 0, VOCAB, dtype=jnp.int32)
    mask = jnp.ones((B, S), jnp.float32).at[1, 6:].set(0.0)   # pad 2 tokens of batch 1
    exposure_duration = jax.random.normal(k_exp, (B,), jnp.float32)
    one_hot_encoding = jax.nn.one_hot(jnp.array([1, 3]), N_EXTRA, dtype=jnp.float32)

    fwd = jax.jit(functools.partial(trident_forward, num_heads=NH))
    out, roberta_output = fwd(params, sent_id, mask, exposure_duration,
                              one_hot_encoding)
    jax.block_until_ready((out, roberta_output))

    assert out.shape == (B, 2)
    assert roberta_output.shape == (B, H)
    assert bool(jnp.all(jnp.isfinite(out))) and bool(jnp.all(jnp.isfinite(roberta_output)))
    print("KERNEL_OK")
</pallas_src>

<mosaic_0001>
module attributes {stable_mosaic.version = 11 : i64} {
  func.func @_layernorm_kernel(%arg0: i32, %arg1: memref<8x32xf32, #tpu.memory_space<vmem>>, %arg2: memref<1x32xf32, #tpu.memory_space<vmem>>, %arg3: memref<1x32xf32, #tpu.memory_space<vmem>>, %arg4: memref<8x32xf32, #tpu.memory_space<vmem>>) attributes {dimension_semantics = [#tpu.dimension_semantics<parallel>], iteration_bounds = array<i64: 2>, scalar_prefetch = 0 : i64, scratch_operands = 0 : i64, tpu.core_type = #tpu.core_type<tc>, window_params = [{transform_indices = @transform_0, window_bounds = array<i64: 8, 32>}, {pipeline_mode = #tpu.pipeline_mode<synchronous>, transform_indices = @transform_1, window_bounds = array<i64: 1, 32>}, {pipeline_mode = #tpu.pipeline_mode<synchronous>, transform_indices = @transform_2, window_bounds = array<i64: 1, 32>}, {transform_indices = @transform_3, window_bounds = array<i64: 8, 32>}]} {
    %c0 = arith.constant 0 : index
    %c0_0 = arith.constant 0 : index
    %0 = vector.load %arg1[%c0, %c0_0] : memref<8x32xf32, #tpu.memory_space<vmem>>, vector<8x32xf32>
    %cst = arith.constant dense<0.000000e+00> : vector<8xf32>
    %1 = vector.multi_reduction <add>, %0, %cst [1] : vector<8x32xf32> to vector<8xf32>
    %2 = vector.shape_cast %1 : vector<8xf32> to vector<8x1xf32>
    %cst_1 = arith.constant 3.200000e+01 : f32
    %3 = vector.broadcast %cst_1 : f32 to vector<8x1xf32>
    %4 = arith.divf %2, %3 : vector<8x1xf32>
    %5 = vector.broadcast %4 : vector<8x1xf32> to vector<8x32xf32>
    %6 = arith.subf %0, %5 : vector<8x32xf32>
    %7 = arith.mulf %6, %6 : vector<8x32xf32>
    %cst_2 = arith.constant dense<0.000000e+00> : vector<8xf32>
    %8 = vector.multi_reduction <add>, %7, %cst_2 [1] : vector<8x32xf32> to vector<8xf32>
    %9 = vector.shape_cast %8 : vector<8xf32> to vector<8x1xf32>
    %cst_3 = arith.constant 3.200000e+01 : f32
    %10 = vector.broadcast %cst_3 : f32 to vector<8x1xf32>
    %11 = arith.divf %9, %10 : vector<8x1xf32>
    %12 = vector.broadcast %4 : vector<8x1xf32> to vector<8x32xf32>
    %13 = arith.subf %0, %12 : vector<8x32xf32>
    %cst_4 = arith.constant 9.99999974E-6 : f32
    %14 = vector.broadcast %cst_4 : f32 to vector<8x1xf32>
    %15 = arith.addf %11, %14 : vector<8x1xf32>
    %16 = math.rsqrt %15 : vector<8x1xf32>
    %17 = vector.broadcast %16 : vector<8x1xf32> to vector<8x32xf32>
    %18 = arith.mulf %13, %17 : vector<8x32xf32>
    %c0_5 = arith.constant 0 : index
    %c0_6 = arith.constant 0 : index
    %19 = vector.load %arg2[%c0_5, %c0_6] : memref<1x32xf32, #tpu.memory_space<vmem>>, vector<1x32xf32>
    %20 = vector.broadcast %19 : vector<1x32xf32> to vector<8x32xf32>
    %21 = arith.mulf %18, %20 : vector<8x32xf32>
    %c0_7 = arith.constant 0 : index
    %c0_8 = arith.constant 0 : index
    %22 = vector.load %arg3[%c0_7, %c0_8] : memref<1x32xf32, #tpu.memory_space<vmem>>, vector<1x32xf32>
    %23 = vector.broadcast %22 : vector<1x32xf32> to vector<8x32xf32>
    %24 = arith.addf %21, %23 : vector<8x32xf32>
    %c0_9 = arith.constant 0 : index
    %c0_10 = arith.constant 0 : index
    %25 = vector.load %arg4[%c0_9, %c0_10] : memref<8x32xf32, #tpu.memory_space<vmem>>, vector<8x32xf32>
    tpu.vector_store %arg4[%c0_9, %c0_10], %24 {strides = array<i32>} : memref<8x32xf32, #tpu.memory_space<vmem>>, vector<8x32xf32>,
    return
  }
  func.func @transform_0(%arg0: i32) -> (i32, i32) {
    %c0_i32 = arith.constant 0 : i32
    %c0_i32_0 = arith.constant 0 : i32
    return %arg0, %c0_i32 : i32, i32
  }
  func.func @transform_1(%arg0: i32) -> (i32, i32) {
    %c0_i32 = arith.constant 0 : i32
    %c0_i32_0 = arith.constant 0 : i32
    %c0_i32_1 = arith.constant 0 : i32
    return %c0_i32, %c0_i32_0 : i32, i32
  }
  func.func @transform_2(%arg0: i32) -> (i32, i32) {
    %c0_i32 = arith.constant 0 : i32
    %c0_i32_0 = arith.constant 0 : i32
    %c0_i32_1 = arith.constant 0 : i32
    return %c0_i32, %c0_i32_0 : i32, i32
  }
  func.func @transform_3(%arg0: i32) -> (i32, i32) {
    %c0_i32 = arith.constant 0 : i32
    %c0_i32_0 = arith.constant 0 : i32
    return %arg0, %c0_i32 : i32, i32
  }
}

module attributes {stable_mosaic.version = 11 : i64} {
  func.func @_encoder_layer_kernel(%arg0: i32, %arg1: memref<8x32xf32, #tpu.memory_space<vmem>>, %arg2: memref<1x1x8xf32, #tpu.memory_space<vmem>>, %arg3: memref<32x96xbf16, #tpu.memory_space<vmem>>, %arg4: memref<1x96xf32, #tpu.memory_space<vmem>>, %arg5: memref<32x32xbf16, #tpu.memory_space<vmem>>, %arg6: memref<1x32xf32, #tpu.memory_space<vmem>>, %arg7: memref<1x32xf32, #tpu.memory_space<vmem>>, %arg8: memref<1x32xf32, #tpu.memory_space<vmem>>, %arg9: memref<32x64xbf16, #tpu.memory_space<vmem>>, %arg10: memref<1x64xf32, #tpu.memory_space<vmem>>, %arg11: memref<64x32xbf16, #tpu.memory_space<vmem>>, %arg12: memref<1x32xf32, #tpu.memory_space<vmem>>, %arg13: memref<1x32xf32, #tpu.memory_space<vmem>>, %arg14: memref<1x32xf32, #tpu.memory_space<vmem>>, %arg15: memref<8x32xf32, #tpu.memory_space<vmem>>) attributes {dimension_semantics = [#tpu.dimension_semantics<parallel>], iteration_bounds = array<i64: 2>, scalar_prefetch = 0 : i64, scratch_operands = 0 : i64, tpu.core_type = #tpu.core_type<tc>, window_params = [{transform_indices = @transform_0, window_bounds = array<i64: 8, 32>}, {transform_indices = @transform_1, window_bounds = array<i64: 1, 1, 8>}, {pipeline_mode = #tpu.pipeline_mode<synchronous>, transform_indices = @transform_2, window_bounds = array<i64: 32, 96>}, {pipeline_mode = #tpu.pipeline_mode<synchronous>, transform_indices = @transform_3, window_bounds = array<i64: 1, 96>}, {pipeline_mode = #tpu.pipeline_mode<synchronous>, transform_indices = @transform_4, window_bounds = array<i64: 32, 32>}, {pipeline_mode = #tpu.pipeline_mode<synchronous>, transform_indices = @transform_5, window_bounds = array<i64: 1, 32>}, {pipeline_mode = #tpu.pipeline_mode<synchronous>, transform_indices = @transform_6, window_bounds = array<i64: 1, 32>}, {pipeline_mode = #tpu.pipeline_mode<synchronous>, transform_indices = @transform_7, window_bounds = array<i64: 1, 32>}, {pipeline_mode = #tpu.pipeline_mode<synchronous>, transform_indices = @transform_8, window_bounds = array<i64: 32, 64>}, {pipeline_mode = #tpu.pipeline_mode<synchronous>, transform_indices = @transform_9, window_bounds = array<i64: 1, 64>}, {pipeline_mode = #tpu.pipeline_mode<synchronous>, transform_indices = @transform_10, window_bounds = array<i64: 64, 32>}, {pipeline_mode = #tpu.pipeline_mode<synchronous>, transform_indices = @transform_11, window_bounds = array<i64: 1, 32>}, {pipeline_mode = #tpu.pipeline_mode<synchronous>, transform_indices = @transform_12, window_bounds = array<i64: 1, 32>}, {pipeline_mode = #tpu.pipeline_mode<synchronous>, transform_indices = @transform_13, window_bounds = array<i64: 1, 32>}, {transform_indices = @transform_14, window_bounds = array<i64: 8, 32>}]} {
    %c0 = arith.constant 0 : index
    %c0_0 = arith.constant 0 : index
    %0 = vector.load %arg1[%c0, %c0_0] : memref<8x32xf32, #tpu.memory_space<vmem>>, vector<8x32xf32>
    %1 = arith.truncf %0 : vector<8x32xf32> to vector<8x32xbf16>
    %c0_1 = arith.constant 0 : index
    %c0_2 = arith.constant 0 : index
    %2 = vector.load %arg3[%c0_1, %c0_2] : memref<32x96xbf16, #tpu.memory_space<vmem>>, vector<32x96xbf16>
    %cst = arith.constant dense<0.000000e+00> : vector<8x96xf32>
    %3 = tpu.matmul %1, %2, %cst {dimension_numbers = #tpu.dot_dimension_numbers<[1], [0], [0], [1], [0, 0, 1, 1], [], []>} : vector<8x32xbf16>, vector<32x96xbf16>, vector<8x96xf32> -> vector<8x96xf32>
    %c0_3 = arith.constant 0 : index
    %c0_4 = arith.constant 0 : index
    %4 = vector.load %arg4[%c0_3, %c0_4] : memref<1x96xf32, #tpu.memory_space<vmem>>, vector<1x96xf32>
    %5 = vector.broadcast %4 : vector<1x96xf32> to vector<8x96xf32>
    %6 = arith.addf %3, %5 : vector<8x96xf32>
    %7 = vector.extract_strided_slice %6 {offsets = [0, 0], sizes = [8, 32], strides = [1, 1]} : vector<8x96xf32> to vector<8x32xf32>
    %8 = vector.extract_strided_slice %6 {offsets = [0, 32], sizes = [8, 32], strides = [1, 1]} : vector<8x96xf32> to vector<8x32xf32>
    %9 = vector.extract_strided_slice %6 {offsets = [0, 64], sizes = [8, 32], strides = [1, 1]} : vector<8x96xf32> to vector<8x32xf32>
    %10 = vector.extract_strided_slice %7 {offsets = [0, 0], sizes = [8, 16], strides = [1, 1]} : vector<8x32xf32> to vector<8x16xf32>
    %11 = vector.extract_strided_slice %7 {offsets = [0, 16], sizes = [8, 16], strides = [1, 1]} : vector<8x32xf32> to vector<8x16xf32>
    %12 = vector.shape_cast %10 : vector<8x16xf32> to vector<1x8x16xf32>
    %13 = vector.shape_cast %11 : vector<8x16xf32> to vector<1x8x16xf32>
    %14 = tpu.concatenate %12, %13 in 0 : vector<1x8x16xf32>, vector<1x8x16xf32> -> vector<2x8x16xf32>
    %15 = arith.truncf %14 : vector<2x8x16xf32> to vector<2x8x16xbf16>
    %16 = vector.extract_strided_slice %8 {offsets = [0, 0], sizes = [8, 16], strides = [1, 1]} : vector<8x32xf32> to vector<8x16xf32>
    %17 = vector.extract_strided_slice %8 {offsets = [0, 16], sizes = [8, 16], strides = [1, 1]} : vector<8x32xf32> to vector<8x16xf32>
    %18 = vector.shape_cast %16 : vector<8x16xf32> to vector<1x8x16xf32>
    %19 = vector.shape_cast %17 : vector<8x16xf32> to vector<1x8x16xf32>
    %20 = tpu.concatenate %18, %19 in 0 : vector<1x8x16xf32>, vector<1x8x16xf32> -> vector<2x8x16xf32>
    %21 = arith.truncf %20 : vector<2x8x16xf32> to vector<2x8x16xbf16>
    %22 = vector.extract_strided_slice %9 {offsets = [0, 0], sizes = [8, 16], strides = [1, 1]} : vector<8x32xf32> to vector<8x16xf32>
    %23 = vector.extract_strided_slice %9 {offsets = [0, 16], sizes = [8, 16], strides = [1, 1]} : vector<8x32xf32> to vector<8x16xf32>
    %24 = vector.shape_cast %22 : vector<8x16xf32> to vector<1x8x16xf32>
    %25 = vector.shape_cast %23 : vector<8x16xf32> to vector<1x8x16xf32>
    %26 = tpu.concatenate %24, %25 in 0 : vector<1x8x16xf32>, vector<1x8x16xf32> -> vector<2x8x16xf32>
    %27 = arith.truncf %26 : vector<2x8x16xf32> to vector<2x8x16xbf16>
    %c0_5 = arith.constant 0 : index
    %c0_6 = arith.constant 0 : index
    %c0_7 = arith.constant 0 : index
    %28 = vector.load %arg2[%c0_5, %c0_6, %c0_7] : memref<1x1x8xf32, #tpu.memory_space<vmem>>, vector<1x1x8xf32>
    %29 = vector.shape_cast %28 : vector<1x1x8xf32> to vector<1x8xf32>
    "tpu.trace_start"() <{level = 10 : i32, message = "hqd,hkd->hqk"}> : () -> ()
    %cst_8 = arith.constant dense<0.000000e+00> : vector<2x8x8xf32>
    %30 = tpu.matmul %15, %21, %cst_8 {dimension_numbers = #tpu.dot_dimension_numbers<[2], [2], [1], [1], [0, 0, 0, 1, 1, 1], [0], [0]>} : vector<2x8x16xbf16>, vector<2x8x16xbf16>, vector<2x8x8xf32> -> vector<2x8x8xf32>
    "tpu.trace_stop"() : () -> ()
    %31 = vector.shape_cast %29 : vector<1x8xf32> to vector<1x1x8xf32>
    %32 = vector.broadcast %31 : vector<1x1x8xf32> to vector<2x8x8xf32>
    %33 = arith.addf %30, %32 : vector<2x8x8xf32>
    %cst_9 = arith.constant dense<0xFF800000> : vector<2x8xf32>
    %34 = vector.multi_reduction <maximumf>, %33, %cst_9 [2] : vector<2x8x8xf32> to vector<2x8xf32>
    %35 = vector.shape_cast %34 : vector<2x8xf32> to vector<2x8x1xf32>
    %36 = vector.broadcast %35 : vector<2x8x1xf32> to vector<2x8x8xf32>
    %37 = arith.subf %33, %36 : vector<2x8x8xf32>
    %38 = math.exp %37 : vector<2x8x8xf32>
    %cst_10 = arith.constant dense<0.000000e+00> : vector<2x8xf32>
    %39 = vector.multi_reduction <add>, %38, %cst_10 [2] : vector<2x8x8xf32> to vector<2x8xf32>
    %40 = vector.shape_cast %39 : vector<2x8xf32> to vector<2x8x1xf32>
    %41 = tpu.reciprocal %40 {approx = true} : vector<2x8x1xf32> -> vector<2x8x1xf32>
    %42 = vector.broadcast %41 : vector<2x8x1xf32> to vector<2x8x8xf32>
    %43 = arith.mulf %38, %42 : vector<2x8x8xf32>
    %44 = arith.truncf %43 : vector<2x8x8xf32> to vector<2x8x8xbf16>
    "tpu.trace_start"() <{level = 10 : i32, message = "hqk,hkd->hqd"}> : () -> ()
    %cst_11 = arith.constant dense<0.000000e+00> : vector<2x8x16xf32>
    %45 = tpu.matmul %44, %27, %cst_11 {dimension_numbers = #tpu.dot_dimension_numbers<[2], [1], [1], [2], [0, 0, 0, 1, 1, 2], [0], [0]>} : vector<2x8x8xbf16>, vector<2x8x16xbf16>, vector<2x8x16xf32> -> vector<2x8x16xf32>
    "tpu.trace_stop"() : () -> ()
    %46 = vector.extract_strided_slice %45 {offsets = [0, 0, 0], sizes = [1, 8, 16], strides = [1, 1, 1]} : vector<2x8x16xf32> to vector<1x8x16xf32>
    %47 = vector.shape_cast %46 : vector<1x8x16xf32> to vector<8x16xf32>
    %48 = vector.extract_strided_slice %45 {offsets = [1, 0, 0], sizes = [1, 8, 16], strides = [1, 1, 1]} : vector<2x8x16xf32> to vector<1x8x16xf32>
    %49 = vector.shape_cast %48 : vector<1x8x16xf32> to vector<8x16xf32>
    %50 = tpu.concatenate %47, %49 in 1 : vector<8x16xf32>, vector<8x16xf32> -> vector<8x32xf32>
    %51 = arith.truncf %50 : vector<8x32xf32> to vector<8x32xbf16>
    %c0_12 = arith.constant 0 : index
    %c0_13 = arith.constant 0 : index
    %52 = vector.load %arg5[%c0_12, %c0_13] : memref<32x32xbf16, #tpu.memory_space<vmem>>, vector<32x32xbf16>
    %cst_14 = arith.constant dense<0.000000e+00> : vector<8x32xf32>
    %53 = tpu.matmul %51, %52, %cst_14 {dimension_numbers = #tpu.dot_dimension_numbers<[1], [0], [0], [1], [0, 0, 1, 1], [], []>} : vector<8x32xbf16>, vector<32x32xbf16>, vector<8x32xf32> -> vector<8x32xf32>
    %c0_15 = arith.constant 0 : index
    %c0_16 = arith.constant 0 : index
    %54 = vector.load %arg6[%c0_15, %c0_16] : memref<1x32xf32, #tpu.memory_space<vmem>>, vector<1x32xf32>
    %55 = vector.broadcast %54 : vector<1x32xf32> to vector<8x32xf32>
    %56 = arith.addf %53, %55 : vector<8x32xf32>
    %57 = arith.addf %0, %56 : vector<8x32xf32>
    %c0_17 = arith.constant 0 : index
    %c0_18 = arith.constant 0 : index
    %58 = vector.load %arg7[%c0_17, %c0_18] : memref<1x32xf32, #tpu.memory_space<vmem>>, vector<1x32xf32>
    %c0_19 = arith.constant 0 : index
    %c0_20 = arith.constant 0 : index
    %59 = vector.load %arg8[%c0_19, %c0_20] : memref<1x32xf32, #tpu.memory_space<vmem>>, vector<1x32xf32>
    %cst_21 = arith.constant dense<0.000000e+00> : vector<8xf32>
    %60 = vector.multi_reduction <add>, %57, %cst_21 [1] : vector<8x32xf32> to vector<8xf32>
    %61 = vector.shape_cast %60 : vector<8xf32> to vector<8x1xf32>
    %cst_22 = arith.constant 3.200000e+01 : f32
    %62 = vector.broadcast %cst_22 : f32 to vector<8x1xf32>
    %63 = arith.divf %61, %62 : vector<8x1xf32>
    %64 = vector.broadcast %63 : vector<8x1xf32> to vector<8x32xf32>
    %65 = arith.subf %57, %64 : vector<8x32xf32>
    %66 = arith.mulf %65, %65 : vector<8x32xf32>
    %cst_23 = arith.constant dense<0.000000e+00> : vector<8xf32>
    %67 = vector.multi_reduction <add>, %66, %cst_23 [1] : vector<8x32xf32> to vector<8xf32>
    %68 = vector.shape_cast %67 : vector<8xf32> to vector<8x1xf32>
    %cst_24 = arith.constant 3.200000e+01 : f32
    %69 = vector.broadcast %cst_24 : f32 to vector<8x1xf32>
    %70 = arith.divf %68, %69 : vector<8x1xf32>
    %71 = vector.broadcast %63 : vector<8x1xf32> to vector<8x32xf32>
    %72 = arith.subf %57, %71 : vector<8x32xf32>
    %cst_25 = arith.constant 9.99999974E-6 : f32
    %73 = vector.broadcast %cst_25 : f32 to vector<8x1xf32>
    %74 = arith.addf %70, %73 : vector<8x1xf32>
    %75 = math.rsqrt %74 : vector<8x1xf32>
    %76 = vector.broadcast %75 : vector<8x1xf32> to vector<8x32xf32>
    %77 = arith.mulf %72, %76 : vector<8x32xf32>
    %78 = vector.broadcast %58 : vector<1x32xf32> to vector<8x32xf32>
    %79 = arith.mulf %77, %78 : vector<8x32xf32>
    %80 = vector.broadcast %59 : vector<1x32xf32> to vector<8x32xf32>
    %81 = arith.addf %79, %80 : vector<8x32xf32>
    %82 = arith.truncf %81 : vector<8x32xf32> to vector<8x32xbf16>
    %c0_26 = arith.constant 0 : index
    %c0_27 = arith.constant 0 : index
    %83 = vector.load %arg9[%c0_26, %c0_27] : memref<32x64xbf16, #tpu.memory_space<vmem>>, vector<32x64xbf16>
    %cst_28 = arith.constant dense<0.000000e+00> : vector<8x64xf32>
    %84 = tpu.matmul %82, %83, %cst_28 {dimension_numbers = #tpu.dot_dimension_numbers<[1], [0], [0], [1], [0, 0, 1, 1], [], []>} : vector<8x32xbf16>, vector<32x64xbf16>, vector<8x64xf32> -> vector<8x64xf32>
    %c0_29 = arith.constant 0 : index
    %c0_30 = arith.constant 0 : index
    %85 = vector.load %arg10[%c0_29, %c0_30] : memref<1x64xf32, #tpu.memory_space<vmem>>, vector<1x64xf32>
    %86 = vector.broadcast %85 : vector<1x64xf32> to vector<8x64xf32>
    %87 = arith.addf %84, %86 : vector<8x64xf32>
    %88 = arith.mulf %87, %87 : vector<8x64xf32>
    %89 = arith.mulf %87, %88 : vector<8x64xf32>
    %cst_31 = arith.constant 4.471500e-02 : f32
    %90 = vector.broadcast %cst_31 : f32 to vector<8x64xf32>
    %91 = arith.mulf %90, %89 : vector<8x64xf32>
    %92 = arith.addf %87, %91 : vector<8x64xf32>
    %cst_32 = arith.constant 0.797884583 : f32
    %93 = vector.broadcast %cst_32 : f32 to vector<8x64xf32>
    %94 = arith.mulf %93, %92 : vector<8x64xf32>
    %95 = math.tanh %94 : vector<8x64xf32>
    %cst_33 = arith.constant 1.000000e+00 : f32
    %96 = vector.broadcast %cst_33 : f32 to vector<8x64xf32>
    %97 = arith.addf %96, %95 : vector<8x64xf32>
    %cst_34 = arith.constant 5.000000e-01 : f32
    %98 = vector.broadcast %cst_34 : f32 to vector<8x64xf32>
    %99 = arith.mulf %98, %97 : vector<8x64xf32>
    %100 = arith.mulf %87, %99 : vector<8x64xf32>
    %101 = arith.truncf %100 : vector<8x64xf32> to vector<8x64xbf16>
    %c0_35 = arith.constant 0 : index
    %c0_36 = arith.constant 0 : index
    %102 = vector.load %arg11[%c0_35, %c0_36] : memref<64x32xbf16, #tpu.memory_space<vmem>>, vector<64x32xbf16>
    %cst_37 = arith.constant dense<0.000000e+00> : vector<8x32xf32>
    %103 = tpu.matmul %101, %102, %cst_37 {dimension_numbers = #tpu.dot_dimension_numbers<[1], [0], [0], [1], [0, 0, 1, 1], [], []>} : vector<8x64xbf16>, vector<64x32xbf16>, vector<8x32xf32> -> vector<8x32xf32>
    %c0_38 = arith.constant 0 : index
    %c0_39 = arith.constant 0 : index
    %104 = vector.load %arg12[%c0_38, %c0_39] : memref<1x32xf32, #tpu.memory_space<vmem>>, vector<1x32xf32>
    %105 = vector.broadcast %104 : vector<1x32xf32> to vector<8x32xf32>
    %106 = arith.addf %103, %105 : vector<8x32xf32>
    %107 = arith.addf %81, %106 : vector<8x32xf32>
    %c0_40 = arith.constant 0 : index
    %c0_41 = arith.constant 0 : index
    %108 = vector.load %arg13[%c0_40, %c0_41] : memref<1x32xf32, #tpu.memory_space<vmem>>, vector<1x32xf32>
    %c0_42 = arith.constant 0 : index
    %c0_43 = arith.constant 0 : index
    %109 = vector.load %arg14[%c0_42, %c0_43] : memref<1x32xf32, #tpu.memory_space<vmem>>, vector<1x32xf32>
    %cst_44 = arith.constant dense<0.000000e+00> : vector<8xf32>
    %110 = vector.multi_reduction <add>, %107, %cst_44 [1] : vector<8x32xf32> to vector<8xf32>
    %111 = vector.shape_cast %110 : vector<8xf32> to vector<8x1xf32>
    %cst_45 = arith.constant 3.200000e+01 : f32
    %112 = vector.broadcast %cst_45 : f32 to vector<8x1xf32>
    %113 = arith.divf %111, %112 : vector<8x1xf32>
    %114 = vector.broadcast %113 : vector<8x1xf32> to vector<8x32xf32>
    %115 = arith.subf %107, %114 : vector<8x32xf32>
    %116 = arith.mulf %115, %115 : vector<8x32xf32>
    %cst_46 = arith.constant dense<0.000000e+00> : vector<8xf32>
    %117 = vector.multi_reduction <add>, %116, %cst_46 [1] : vector<8x32xf32> to vector<8xf32>
    %118 = vector.shape_cast %117 : vector<8xf32> to vector<8x1xf32>
    %cst_47 = arith.constant 3.200000e+01 : f32
    %119 = vector.broadcast %cst_47 : f32 to vector<8x1xf32>
    %120 = arith.divf %118, %119 : vector<8x1xf32>
    %121 = vector.broadcast %113 : vector<8x1xf32> to vector<8x32xf32>
    %122 = arith.subf %107, %121 : vector<8x32xf32>
    %cst_48 = arith.constant 9.99999974E-6 : f32
    %123 = vector.broadcast %cst_48 : f32 to vector<8x1xf32>
    %124 = arith.addf %120, %123 : vector<8x1xf32>
    %125 = math.rsqrt %124 : vector<8x1xf32>
    %126 = vector.broadcast %125 : vector<8x1xf32> to vector<8x32xf32>
    %127 = arith.mulf %122, %126 : vector<8x32xf32>
    %128 = vector.broadcast %108 : vector<1x32xf32> to vector<8x32xf32>
    %129 = arith.mulf %127, %128 : vector<8x32xf32>
    %130 = vector.broadcast %109 : vector<1x32xf32> to vector<8x32xf32>
    %131 = arith.addf %129, %130 : vector<8x32xf32>
    %c0_49 = arith.constant 0 : index
    %c0_50 = arith.constant 0 : index
    %132 = vector.load %arg15[%c0_49, %c0_50] : memref<8x32xf32, #tpu.memory_space<vmem>>, vector<8x32xf32>
    tpu.vector_store %arg15[%c0_49, %c0_50], %131 {strides = array<i32>} : memref<8x32xf32, #tpu.memory_space<vmem>>, vector<8x32xf32>,
    return
  }
  func.func @transform_0(%arg0: i32) -> (i32, i32) {
    %c0_i32 = arith.constant 0 : i32
    %c0_i32_0 = arith.constant 0 : i32
    return %arg0, %c0_i32 : i32, i32
  }
  func.func @transform_1(%arg0: i32) -> (i32, i32, i32) {
    %c0_i32 = arith.constant 0 : i32
    %c0_i32_0 = arith.constant 0 : i32
    %c0_i32_1 = arith.constant 0 : i32
    return %arg0, %c0_i32, %c0_i32_0 : i32, i32, i32
  }
  func.func @transform_2(%arg0: i32) -> (i32, i32) {
    %c0_i32 = arith.constant 0 : i32
    %c0_i32_0 = arith.constant 0 : i32
    %c0_i32_1 = arith.constant 0 : i32
    return %c0_i32, %c0_i32_0 : i32, i32
  }
  func.func @transform_3(%arg0: i32) -> (i32, i32) {
    %c0_i32 = arith.constant 0 : i32
    %c0_i32_0 = arith.constant 0 : i32
    %c0_i32_1 = arith.constant 0 : i32
    return %c0_i32, %c0_i32_0 : i32, i32
  }
  func.func @transform_4(%arg0: i32) -> (i32, i32) {
    %c0_i32 = arith.constant 0 : i32
    %c0_i32_0 = arith.constant 0 : i32
    %c0_i32_1 = arith.constant 0 : i32
    return %c0_i32, %c0_i32_0 : i32, i32
  }
  func.func @transform_5(%arg0: i32) -> (i32, i32) {
    %c0_i32 = arith.constant 0 : i32
    %c0_i32_0 = arith.constant 0 : i32
    %c0_i32_1 = arith.constant 0 : i32
    return %c0_i32, %c0_i32_0 : i32, i32
  }
  func.func @transform_6(%arg0: i32) -> (i32, i32) {
    %c0_i32 = arith.constant 0 : i32
    %c0_i32_0 = arith.constant 0 : i32
    %c0_i32_1 = arith.constant 0 : i32
    return %c0_i32, %c0_i32_0 : i32, i32
  }
  func.func @transform_7(%arg0: i32) -> (i32, i32) {
    %c0_i32 = arith.constant 0 : i32
    %c0_i32_0 = arith.constant 0 : i32
    %c0_i32_1 = arith.constant 0 : i32
    return %c0_i32, %c0_i32_0 : i32, i32
  }
  func.func @transform_8(%arg0: i32) -> (i32, i32) {
    %c0_i32 = arith.constant 0 : i32
    %c0_i32_0 = arith.constant 0 : i32
    %c0_i32_1 = arith.constant 0 : i32
    return %c0_i32, %c0_i32_0 : i32, i32
  }
  func.func @transform_9(%arg0: i32) -> (i32, i32) {
    %c0_i32 = arith.constant 0 : i32
    %c0_i32_0 = arith.constant 0 : i32
    %c0_i32_1 = arith.constant 0 : i32
    return %c0_i32, %c0_i32_0 : i32, i32
  }
  func.func @transform_10(%arg0: i32) -> (i32, i32) {
    %c0_i32 = arith.constant 0 : i32
    %c0_i32_0 = arith.constant 0 : i32
    %c0_i32_1 = arith.constant 0 : i32
    return %c0_i32, %c0_i32_0 : i32, i32
  }
  func.func @transform_11(%arg0: i32) -> (i32, i32) {
    %c0_i32 = arith.constant 0 : i32
    %c0_i32_0 = arith.constant 0 : i32
    %c0_i32_1 = arith.constant 0 : i32
    return %c0_i32, %c0_i32_0 : i32, i32
  }
  func.func @transform_12(%arg0: i32) -> (i32, i32) {
    %c0_i32 = arith.constant 0 : i32
    %c0_i32_0 = arith.constant 0 : i32
    %c0_i32_1 = arith.constant 0 : i32
    return %c0_i32, %c0_i32_0 : i32, i32
  }
  func.func @transform_13(%arg0: i32) -> (i32, i32) {
    %c0_i32 = arith.constant 0 : i32
    %c0_i32_0 = arith.constant 0 : i32
    %c0_i32_1 = arith.constant 0 : i32
    return %c0_i32, %c0_i32_0 : i32, i32
  }
  func.func @transform_14(%arg0: i32) -> (i32, i32) {
    %c0_i32 = arith.constant 0 : i32
    %c0_i32_0 = arith.constant 0 : i32
    return %arg0, %c0_i32 : i32, i32
  }
}

module attributes {stable_mosaic.version = 11 : i64} {
  func.func @_dnn_kernel(%arg0: i32, %arg1: memref<2x37xf32, #tpu.memory_space<vmem>>, %arg2: memref<37x32xbf16, #tpu.memory_space<vmem>>, %arg3: memref<1x32xf32, #tpu.memory_space<vmem>>, %arg4: memref<32x32xbf16, #tpu.memory_space<vmem>>, %arg5: memref<1x32xf32, #tpu.memory_space<vmem>>, %arg6: memref<32x2xbf16, #tpu.memory_space<vmem>>, %arg7: memref<1x2xf32, #tpu.memory_space<vmem>>, %arg8: memref<2x2xf32, #tpu.memory_space<vmem>>) attributes {dimension_semantics = [#tpu.dimension_semantics<arbitrary>], iteration_bounds = array<i64: 1>, scalar_prefetch = 0 : i64, scratch_operands = 0 : i64, tpu.core_type = #tpu.core_type<tc>, window_params = [{pipeline_mode = #tpu.pipeline_mode<synchronous>, transform_indices = @transform_0, window_bounds = array<i64: 2, 37>}, {pipeline_mode = #tpu.pipeline_mode<synchronous>, transform_indices = @transform_1, window_bounds = array<i64: 37, 32>}, {pipeline_mode = #tpu.pipeline_mode<synchronous>, transform_indices = @transform_2, window_bounds = array<i64: 1, 32>}, {pipeline_mode = #tpu.pipeline_mode<synchronous>, transform_indices = @transform_3, window_bounds = array<i64: 32, 32>}, {pipeline_mode = #tpu.pipeline_mode<synchronous>, transform_indices = @transform_4, window_bounds = array<i64: 1, 32>}, {pipeline_mode = #tpu.pipeline_mode<synchronous>, transform_indices = @transform_5, window_bounds = array<i64: 32, 2>}, {pipeline_mode = #tpu.pipeline_mode<synchronous>, transform_indices = @transform_6, window_bounds = array<i64: 1, 2>}, {pipeline_mode = #tpu.pipeline_mode<synchronous>, transform_indices = @transform_7, window_bounds = array<i64: 2, 2>}]} {
    %c0 = arith.constant 0 : index
    %c0_0 = arith.constant 0 : index
    %0 = vector.load %arg1[%c0, %c0_0] : memref<2x37xf32, #tpu.memory_space<vmem>>, vector<2x37xf32>
    %1 = arith.truncf %0 : vector<2x37xf32> to vector<2x37xbf16>
    %c0_1 = arith.constant 0 : index
    %c0_2 = arith.constant 0 : index
    %2 = vector.load %arg2[%c0_1, %c0_2] : memref<37x32xbf16, #tpu.memory_space<vmem>>, vector<37x32xbf16>
    %cst = arith.constant dense<0.000000e+00> : vector<2x32xf32>
    %3 = tpu.matmul %1, %2, %cst {dimension_numbers = #tpu.dot_dimension_numbers<[1], [0], [0], [1], [0, 0, 1, 1], [], []>} : vector<2x37xbf16>, vector<37x32xbf16>, vector<2x32xf32> -> vector<2x32xf32>
    %c0_3 = arith.constant 0 : index
    %c0_4 = arith.constant 0 : index
    %4 = vector.load %arg3[%c0_3, %c0_4] : memref<1x32xf32, #tpu.memory_space<vmem>>, vector<1x32xf32>
    %5 = vector.broadcast %4 : vector<1x32xf32> to vector<2x32xf32>
    %6 = arith.addf %3, %5 : vector<2x32xf32>
    %cst_5 = arith.constant 0.000000e+00 : f32
    %7 = vector.broadcast %cst_5 : f32 to vector<2x32xf32>
    %8 = arith.maximumf %6, %7 : vector<2x32xf32>
    %9 = arith.truncf %8 : vector<2x32xf32> to vector<2x32xbf16>
    %c0_6 = arith.constant 0 : index
    %c0_7 = arith.constant 0 : index
    %10 = vector.load %arg4[%c0_6, %c0_7] : memref<32x32xbf16, #tpu.memory_space<vmem>>, vector<32x32xbf16>
    %cst_8 = arith.constant dense<0.000000e+00> : vector<2x32xf32>
    %11 = tpu.matmul %9, %10, %cst_8 {dimension_numbers = #tpu.dot_dimension_numbers<[1], [0], [0], [1], [0, 0, 1, 1], [], []>} : vector<2x32xbf16>, vector<32x32xbf16>, vector<2x32xf32> -> vector<2x32xf32>
    %c0_9 = arith.constant 0 : index
    %c0_10 = arith.constant 0 : index
    %12 = vector.load %arg5[%c0_9, %c0_10] : memref<1x32xf32, #tpu.memory_space<vmem>>, vector<1x32xf32>
    %13 = vector.broadcast %12 : vector<1x32xf32> to vector<2x32xf32>
    %14 = arith.addf %11, %13 : vector<2x32xf32>
    %cst_11 = arith.constant 0.000000e+00 : f32
    %15 = vector.broadcast %cst_11 : f32 to vector<2x32xf32>
    %16 = arith.maximumf %14, %15 : vector<2x32xf32>
    %17 = arith.truncf %16 : vector<2x32xf32> to vector<2x32xbf16>
    %c0_12 = arith.constant 0 : index
    %c0_13 = arith.constant 0 : index
    %18 = vector.load %arg6[%c0_12, %c0_13] : memref<32x2xbf16, #tpu.memory_space<vmem>>, vector<32x2xbf16>
    %cst_14 = arith.constant dense<0.000000e+00> : vector<2x2xf32>
    %19 = tpu.matmul %17, %18, %cst_14 {dimension_numbers = #tpu.dot_dimension_numbers<[1], [0], [0], [1], [0, 0, 1, 1], [], []>} : vector<2x32xbf16>, vector<32x2xbf16>, vector<2x2xf32> -> vector<2x2xf32>
    %c0_15 = arith.constant 0 : index
    %c0_16 = arith.constant 0 : index
    %20 = vector.load %arg7[%c0_15, %c0_16] : memref<1x2xf32, #tpu.memory_space<vmem>>, vector<1x2xf32>
    %21 = vector.broadcast %20 : vector<1x2xf32> to vector<2x2xf32>
    %22 = arith.addf %19, %21 : vector<2x2xf32>
    %c0_17 = arith.constant 0 : index
    %c0_18 = arith.constant 0 : index
    %23 = vector.load %arg8[%c0_17, %c0_18] : memref<2x2xf32, #tpu.memory_space<vmem>>, vector<2x2xf32>
    tpu.vector_store %arg8[%c0_17, %c0_18], %22 {strides = array<i32>} : memref<2x2xf32, #tpu.memory_space<vmem>>, vector<2x2xf32>,
    return
  }
  func.func @transform_0(%arg0: i32) -> (i32, i32) {
    %c0_i32 = arith.constant 0 : i32
    %c0_i32_0 = arith.constant 0 : i32
    %c0_i32_1 = arith.constant 0 : i32
    return %c0_i32, %c0_i32_0 : i32, i32
  }
  func.func @transform_1(%arg0: i32) -> (i32, i32) {
    %c0_i32 = arith.constant 0 : i32
    %c0_i32_0 = arith.constant 0 : i32
    %c0_i32_1 = arith.constant 0 : i32
    return %c0_i32, %c0_i32_0 : i32, i32
  }
  func.func @transform_2(%arg0: i32) -> (i32, i32) {
    %c0_i32 = arith.constant 0 : i32
    %c0_i32_0 = arith.constant 0 : i32
    %c0_i32_1 = arith.constant 0 : i32
    return %c0_i32, %c0_i32_0 : i32, i32
  }
  func.func @transform_3(%arg0: i32) -> (i32, i32) {
    %c0_i32 = arith.constant 0 : i32
    %c0_i32_0 = arith.constant 0 : i32
    %c0_i32_1 = arith.constant 0 : i32
    return %c0_i32, %c0_i32_0 : i32, i32
  }
  func.func @transform_4(%arg0: i32) -> (i32, i32) {
    %c0_i32 = arith.constant 0 : i32
    %c0_i32_0 = arith.constant 0 : i32
    %c0_i32_1 = arith.constant 0 : i32
    return %c0_i32, %c0_i32_0 : i32, i32
  }
  func.func @transform_5(%arg0: i32) -> (i32, i32) {
    %c0_i32 = arith.constant 0 : i32
    %c0_i32_0 = arith.constant 0 : i32
    %c0_i32_1 = arith.constant 0 : i32
    return %c0_i32, %c0_i32_0 : i32, i32
  }
  func.func @transform_6(%arg0: i32) -> (i32, i32) {
    %c0_i32 = arith.constant 0 : i32
    %c0_i32_0 = arith.constant 0 : i32
    %c0_i32_1 = arith.constant 0 : i32
    return %c0_i32, %c0_i32_0 : i32, i32
  }
  func.func @transform_7(%arg0: i32) -> (i32, i32) {
    %c0_i32 = arith.constant 0 : i32
    %c0_i32_0 = arith.constant 0 : i32
    %c0_i32_1 = arith.constant 0 : i32
    return %c0_i32, %c0_i32_0 : i32, i32
  }
}

</mosaic_0001>

<llo_original>
// kernel: trident_forward.4
$region0: #{trident_forward.4}
  #allocation0 [shape = 'u32[]', space=smem, size = 0x4, offset = 0x4, fixed_abs, tag = 'smem constant byte address 0x4 - core index']
  #allocation1 [shape = 'u32[72,128]{1,0:T(1,128)}', space=vmem, size = 0x9000, scoped, tag = 'internal scratch']
  %s0 = inlined_call_operand.vmem [shape: f32[16,32], index: 0, kind: input, shape index: {}]
  %s1 = inlined_call_operand.vmem [shape: f32[1,32], index: 1, kind: input, shape index: {}]
  %s2 = inlined_call_operand.vmem [shape: f32[1,32], index: 2, kind: input, shape index: {}]
  %s3 = inlined_call_operand.vmem [shape: f32[16,32], index: 3, kind: output, shape index: {}]
  %s4 = sld [smem:[#allocation0]]
  $region45: #{trident_forward.4} parent=0
    _
  %s6 = ssub.s32 1, %s4
  %s7 = scalar_select 0, %s6, %s4
  loop: start=0, step=1, limit=4
  $region2: #{trident_forward.4} parent=0 // loop_pre_header
    _
  $region3: #{trident_forward.4} parent=0 // loop_header
    %s9 = sphi 0, %s13
    %p10 = scmp.ge.s32.totalorder %s9, 4
    %s19 = sphi 0, %s21
    %s22 = sphi 0, %s19
    %s23 = sphi 0, %s22
    %s39 = sphi 0, %s23
    %s43 = sphi 0, %s43
    %s45 = sphi 0, %s43
    %s46 = sphi 0, %s45
    %s60 = sphi 0, %s46
    %s64 = sphi 0, %s64
    %s66 = sphi 0, %s64
    %s67 = sphi 0, %s66
    %s81 = sphi 0, %s67
    %s87 = sphi 0, %s89
    %s90 = sphi 0, %s87
    %s91 = sphi 0, %s90
    %s107 = sphi 0, %s91
  $region4: #{trident_forward.4} parent=0 // loop_header_branch
    %12 = sbr.rel (%p10) target = $region8
  $region5: #{trident_forward.4} parent=0 // loop_body
    %s14 = ssub.s32 %s9, 1
    %s15 = ssub.s32 %s9, 2
    %s16 = sadd.s32 %s9, 1
    %s17 = ssub.s32 %s9, %s16
    %p18 = scmp.eq.s32.totalorder %s17, 0
    %s20 = sadd.s32 %s19, 1
    %s21 = scalar_select %p18, %s19, %s20
    %p24 = pneg %p18
    %p25 = scmp.eq.s32.totalorder %s9, 1
    %p26 = por %p24, %p25
    %p27 = scmp.ne.s32.totalorder %s19, %s22
    %p28 = scmp.eq.s32.totalorder %s9, 0
    %p29 = por %p27, %p28
    %p30 = scmp.ne.s32.totalorder %s19, %s22
    %p31 = scmp.eq.s32.totalorder %s14, 1
    %p32 = por %p30, %p31
    %p33 = scmp.ne.s32.totalorder %s22, %s23
    %p34 = scmp.eq.s32.totalorder %s14, 0
    %p35 = por %p33, %p34
    %p36 = scmp.ne.s32.totalorder %s22, %s23
    %p37 = scmp.eq.s32.totalorder %s15, 1
    %p38 = por %p36, %p37
    %p40 = scmp.ne.s32.totalorder %s23, %s39
    %p41 = scmp.eq.s32.totalorder %s15, 0
    %p42 = por %p40, %p41
    %s44 = sadd.s32 %s43, 1
    %p47 = scmp.eq.s32.totalorder %s9, 1
    %p48 = scmp.ne.s32.totalorder %s43, %s45
    %p49 = scmp.eq.s32.totalorder %s9, 0
    %p50 = por %p48, %p49
    %p51 = scmp.ne.s32.totalorder %s43, %s45
    %p52 = scmp.eq.s32.totalorder %s14, 1
    %p53 = por %p51, %p52
    %p54 = scmp.ne.s32.totalorder %s45, %s46
    %p55 = scmp.eq.s32.totalorder %s14, 0
    %p56 = por %p54, %p55
    %p57 = scmp.ne.s32.totalorder %s45, %s46
    %p58 = scmp.eq.s32.totalorder %s15, 1
    %p59 = por %p57, %p58
    %p61 = scmp.ne.s32.totalorder %s46, %s60
    %p62 = scmp.eq.s32.totalorder %s15, 0
    %p63 = por %p61, %p62
    %s65 = sadd.s32 %s64, 1
    %p68 = scmp.eq.s32.totalorder %s9, 1
    %p69 = scmp.ne.s32.totalorder %s64, %s66
    %p70 = scmp.eq.s32.totalorder %s9, 0
    %p71 = por %p69, %p70
    %p72 = scmp.ne.s32.totalorder %s64, %s66
    %p73 = scmp.eq.s32.totalorder %s14, 1
    %p74 = por %p72, %p73
    %p75 = scmp.ne.s32.totalorder %s66, %s67
    %p76 = scmp.eq.s32.totalorder %s14, 0
    %p77 = por %p75, %p76
    %p78 = scmp.ne.s32.totalorder %s66, %s67
    %p79 = scmp.eq.s32.totalorder %s15, 1
    %p80 = por %p78, %p79
    %p82 = scmp.ne.s32.totalorder %s67, %s81
    %p83 = scmp.eq.s32.totalorder %s15, 0
    %p84 = por %p82, %p83
    %s85 = ssub.s32 %s9, %s16
    %p86 = scmp.eq.s32.totalorder %s85, 0
    %s88 = sadd.s32 %s87, 1
    %s89 = scalar_select %p86, %s87, %s88
    %p92 = pneg %p86
    %p93 = scmp.eq.s32.totalorder %s9, 1
    %p94 = por %p92, %p93
    %p95 = scmp.ne.s32.totalorder %s87, %s90
    %p96 = scmp.eq.s32.totalorder %s9, 0
    %p97 = por %p95, %p96
    %p98 = scmp.ne.s32.totalorder %s87, %s90
    %p99 = scmp.eq.s32.totalorder %s14, 1
    %p100 = por %p98, %p99
    %p101 = scmp.ne.s32.totalorder %s90, %s91
    %p102 = scmp.eq.s32.totalorder %s14, 0
    %p103 = por %p101, %p102
    %p104 = scmp.ne.s32.totalorder %s90, %s91
    %p105 = scmp.eq.s32.totalorder %s15, 1
    %p106 = por %p104, %p105
    %p108 = scmp.ne.s32.totalorder %s91, %s107
    %p109 = scmp.eq.s32.totalorder %s15, 0
    %p110 = por %p108, %p109
    %p111 = scmp.le.s32.totalorder 1, %s9
    %p112 = scmp.lt.s32.totalorder %s9, 3
    %p113 = pnand %p111, %p112
    %p114 = pneg %p113
    // Predicated region
    $region9: #{trident_forward.4} parent=5 // pred_check
      _
    $region10: #{trident_forward.4} parent=5 // pred_check_branch
      %116 = sbr.rel (%p113) target = $region12
    $region11: #{trident_forward.4} parent=5 // pred_region
      %s117 = ssub.s32 %s9, 1
      // Predicated region
      $region13: #{trident_forward.4} parent=11 // pred_check
        %p118 = pneg %p56
      $region14: #{trident_forward.4} parent=11 // pred_check_branch
        %120 = sbr.rel (%p118) target = $region16
      $region15: #{trident_forward.4} parent=11 // pred_region
        _
      $region16: #{trident_forward.4} parent=11 // pred_fallthru
        _
      // Predicated region
      $region17: #{trident_forward.4} parent=11 // pred_check
        %p121 = pneg %p77
      $region18: #{trident_forward.4} parent=11 // pred_check_branch
        %123 = sbr.rel (%p121) target = $region20
      $region19: #{trident_forward.4} parent=11 // pred_region
        _
      $region20: #{trident_forward.4} parent=11 // pred_fallthru
        _
    $region12: #{trident_forward.4} parent=5 // pred_fallthru
      _
    %p124 = scmp.lt.s32.totalorder %s9, 2
    // Predicated region
    $region21: #{trident_forward.4} parent=5 // pred_check
      %p125 = pneg %p124
    $region22: #{trident_forward.4} parent=5 // pred_check_branch
      %127 = sbr.rel (%p125) target = $region24
    $region23: #{trident_forward.4} parent=5 // pred_region
      // Predicated region
      $region25: #{trident_forward.4} parent=23 // pred_check
        %p128 = pneg %p29
      $region26: #{trident_forward.4} parent=23 // pred_check_branch
        %130 = sbr.rel (%p128) target = $region28
      $region27: #{trident_forward.4} parent=23 // pred_region
        %p131 = scmp.lt.s32.totalorder %s9, 1
        %s132 = scalar_select %p131, %s9, 1
        %s133 = smul.addr %s132, 8
        %s134 = scalar_lea.vmem %s0, %s133
      $region28: #{trident_forward.4} parent=23 // pred_fallthru
        _
    $region24: #{trident_forward.4} parent=5 // pred_fallthru
      _
    %p135 = scmp.le.s32.totalorder 1, %s9
    %p136 = scmp.lt.s32.totalorder %s9, 3
    %p137 = pnand %p135, %p136
    %p138 = pneg %p137
    // Predicated region
    $region29: #{trident_forward.4} parent=5 // pred_check
      _
    $region30: #{trident_forward.4} parent=5 // pred_check_branch
      %140 = sbr.rel (%p137) target = $region32
    $region31: #{trident_forward.4} parent=5 // pred_region
      %s141 = ssub.s32 %s9, 1
      %p142 = scmp.lt.s32.totalorder %s14, 1
      %s143 = scalar_select %p142, %s14, 1
      %s144 = smul.addr %s143, 8
      %s145 = scalar_lea.vmem %s0, %s144
      %p146 = pneg %p35
      %p147 = pneg %p32
      %p148 = pneg %p56
      %p149 = pneg %p53
      %p150 = pneg %p77
      %p151 = pneg %p74
      %p152 = pneg %p103
      %p153 = pneg %p100
      %p154 = scmp.lt.s32.totalorder %s14, 1
      %s155 = scalar_select %p154, %s14, 1
      %s156 = smul.addr %s155, 8
      %s157 = scalar_lea.vmem %s3, %s156
      %p158 = scmp.lt.s32.totalorder %s14, 1
      %s159 = scalar_select %p158, %s14, 1
      %s160 = smul.addr %s159, 8
      %s161 = scalar_lea.vmem %s0, %s160
      %p162 = scmp.lt.s32.totalorder %s14, 1
      %s163 = scalar_select %p162, %s14, 1
      %s164 = smul.addr %s163, 8
      %s165 = scalar_lea.vmem %s3, %s164
      %v166 = vld [vmem:[%s161] sm:$0xff]
      %vm167 = vcmask 261120
      %v168 = vsel %vm167, %v166, 0.0
      %169 = vadd.xlane.f32.xlu0 %v168
      %v170 = vpop.xlane.xlu0 %169
      %v171 = vrcp.pop 32.0
      %v172 = vmul.f32 32.0, %v171
      %v173 = vsub.f32 1.0, %v172
      %v174 = vmul.f32 %v171, %v173
      %v175 = vadd.f32 %v171, %v174
      %vm176 = vweird.f32 %v171
      %v177 = vsel %vm176, %v171, %v175
      %v178 = vmul.f32 %v170, %v177
      %v179 = vsub.f32 %v166, %v178
      %v180 = vmul.f32 %v179, %v179
      %v181 = vsel %vm167, %v180, 0.0
      %182 = vadd.xlane.f32.xlu0 %v181
      %v183 = vpop.xlane.xlu0 %182
      %v184 = vmul.f32 %v183, %v177
      %v185 = vadd.f32 %v184, 1e-05
      %v186 = vrsqrt.pop %v185
      %v187 = vmul.f32 %v186, %v185
      %v188 = vmul.f32 %v187, %v186
      %v189 = vmul.f32 0.5, %v188
      %v190 = vsub.f32 1.5, %v189
      %v191 = vmul.f32 %v186, %v190
      %vm192 = vweird.f32 %v185
      %vm193 = vweird.f32 %v186
      %vm194 = vmor %vm192, %vm193
      %v195 = vsel %vm194, %v186, %v191
      %v196 = vmul.f32 %v179, %v195
      %v197 = vld [vmem:[%s1] sm:$0x1]
      %v199 = vperm.slane %v197, 0
      %v201 = vmul.f32 %v196, %v199
      %v202 = vld [vmem:[%s2] sm:$0x1]
      %v204 = vperm.slane %v202, 0
      %v206 = vadd.f32 %v201, %v204
      %207 = vst.msk [vmem:[%s165] sm:$0xff] %vm167, %v206
      %p208 = scmp.lt.s32.totalorder %s14, 1
      %s209 = scalar_select %p208, %s14, 1
      %s210 = smul.addr %s209, 8
      %s211 = scalar_lea.vmem %s3, %s210
      // Predicated region
      $region33: #{trident_forward.4} parent=31 // pred_check
        %p212 = pneg %p100
      $region34: #{trident_forward.4} parent=31 // pred_check_branch
        %214 = sbr.rel (%p212) target = $region36
      $region35: #{trident_forward.4} parent=31 // pred_region
        _
      $region36: #{trident_forward.4} parent=31 // pred_fallthru
        _
    $region32: #{trident_forward.4} parent=5 // pred_fallthru
      _
    %p215 = scmp.le.s32.totalorder 2, %s9
    // Predicated region
    $region37: #{trident_forward.4} parent=5 // pred_check
      %p216 = pneg %p215
    $region38: #{trident_forward.4} parent=5 // pred_check_branch
      %218 = sbr.rel (%p216) target = $region40
    $region39: #{trident_forward.4} parent=5 // pred_region
      %s219 = ssub.s32 %s9, 2
      // Predicated region
      $region41: #{trident_forward.4} parent=39 // pred_check
        %p220 = pneg %p106
      $region42: #{trident_forward.4} parent=39 // pred_check_branch
        %222 = sbr.rel (%p220) target = $region44
      $region43: #{trident_forward.4} parent=39 // pred_region
        %p223 = scmp.lt.s32.totalorder %s15, 1
        %s224 = scalar_select %p223, %s15, 1
        %s225 = smul.addr %s224, 8
        %s226 = scalar_lea.vmem %s3, %s225
      $region44: #{trident_forward.4} parent=39 // pred_fallthru
        _
    $region40: #{trident_forward.4} parent=5 // pred_fallthru
      _
  $region6: #{trident_forward.4} parent=0 // loop_footer
    %s13 = sadd.s32 1, %s9
  $region7: #{trident_forward.4} parent=0 // loop_footer_branch
    %8 = sbr.rel target = $region3
  $region8: #{trident_forward.4} parent=0 // loop_exit
    _

// kernel: trident_forward.7
$region0: #{trident_forward.7}
  #allocation0 [shape = 'u32[]', space=smem, size = 0x4, offset = 0x4, fixed_abs, tag = 'smem constant byte address 0x4 - core index']
  #allocation1 [shape = 'u32[72,128]{1,0:T(1,128)}', space=vmem, size = 0x9000, scoped, tag = 'internal scratch']
  %s0 = inlined_call_operand.vmem [shape: f32[2,37], index: 0, kind: input, shape index: {}]
  %s1 = inlined_call_operand.vmem [shape: bf16[37,32], index: 1, kind: input, shape index: {}]
  %s2 = inlined_call_operand.vmem [shape: f32[1,32], index: 2, kind: input, shape index: {}]
  %s3 = inlined_call_operand.vmem [shape: bf16[32,32], index: 3, kind: input, shape index: {}]
  %s4 = inlined_call_operand.vmem [shape: f32[1,32], index: 4, kind: input, shape index: {}]
  %s5 = inlined_call_operand.vmem [shape: bf16[32,2], index: 5, kind: input, shape index: {}]
  %s6 = inlined_call_operand.vmem [shape: f32[1,2], index: 6, kind: input, shape index: {}]
  %s7 = inlined_call_operand.hbm [shape: f32[2,2], index: 7, kind: output, shape index: {}]
  %s8 = sld [smem:[#allocation0]]
  $region38: #{trident_forward.7} parent=0
    _
  %s10 = ssub.s32 1, %s8
  %s11 = scalar_select 0, %s10, %s8
  $region1: #{trident_forward.7} parent=0
    #allocation2 [shape = 'u8[1024]{0}', space=vmem, size = 0x400, scoped, tag = 'output window, operand 0, single buffered']
    #allocation3 [shape = 's32[1]{0}', space=sflag, size = 0x4, scoped, tag = 'scoped memory for trident_forward.7']
    %12 = vsyncpa [#allocation3], 0
    // Predicated region
    $region2: #{trident_forward.7} parent=1 // pred_check
      _
    $region3: #{trident_forward.7} parent=1 // pred_check_branch
      %14 = sbr.rel (0) target = $region5
    $region4: #{trident_forward.7} parent=1 // pred_region
      _
    $region5: #{trident_forward.7} parent=1 // pred_fallthru
      _
    // Predicated region
    $region6: #{trident_forward.7} parent=1 // pred_check
      _
    $region7: #{trident_forward.7} parent=1 // pred_check_branch
      %16 = sbr.rel (0) target = $region9
    $region8: #{trident_forward.7} parent=1 // pred_region
      _
    $region9: #{trident_forward.7} parent=1 // pred_fallthru
      _
    // Predicated region
    $region10: #{trident_forward.7} parent=1 // pred_check
      _
    $region11: #{trident_forward.7} parent=1 // pred_check_branch
      %18 = sbr.rel (0) target = $region13
    $region12: #{trident_forward.7} parent=1 // pred_region
      _
    $region13: #{trident_forward.7} parent=1 // pred_fallthru
      _
    // Predicated region
    $region14: #{trident_forward.7} parent=1 // pred_check
      _
    $region15: #{trident_forward.7} parent=1 // pred_check_branch
      %20 = sbr.rel (0) target = $region17
    $region16: #{trident_forward.7} parent=1 // pred_region
      _
    $region17: #{trident_forward.7} parent=1 // pred_fallthru
      _
    // Predicated region
    $region18: #{trident_forward.7} parent=1 // pred_check
      _
    $region19: #{trident_forward.7} parent=1 // pred_check_branch
      %22 = sbr.rel (0) target = $region21
    $region20: #{trident_forward.7} parent=1 // pred_region
      _
    $region21: #{trident_forward.7} parent=1 // pred_fallthru
      _
    // Predicated region
    $region22: #{trident_forward.7} parent=1 // pred_check
      _
    $region23: #{trident_forward.7} parent=1 // pred_check_branch
      %24 = sbr.rel (0) target = $region25
    $region24: #{trident_forward.7} parent=1 // pred_region
      _
    $region25: #{trident_forward.7} parent=1 // pred_fallthru
      _
    // Predicated region
    $region26: #{trident_forward.7} parent=1 // pred_check
      _
    $region27: #{trident_forward.7} parent=1 // pred_check_branch
      %26 = sbr.rel (0) target = $region29
    $region28: #{trident_forward.7} parent=1 // pred_region
      _
    $region29: #{trident_forward.7} parent=1 // pred_fallthru
      _
    %v28 = vld [vmem:[%s0] sm:$0x3]
    %v29 = vpack.c.bf16 %v28, %v28
    %v30 = vld [vmem:[%s1] sm:$0xf]
    %v31 = vld [vmem:[%s1 + $0x4] sm:$0xf]
    %v32 = vld [vmem:[%s1 + $0x8] sm:$0xf]
    %v33 = vld [vmem:[%s1 + $0xc] sm:$0xf]
    %v34 = vld [vmem:[%s1 + $0x10] sm:$0x7]
    %v35 = vld [vmem:[%s2] sm:$0x1]
    %v37 = vperm.slane %v35, 0
    %v44 = vunpack.c.l.b16 %v30
    %v45 = vunpack.c.l.b16 %v31
    %v46 = vunpack.c.l.b16 %v32
    %v47 = vunpack.c.l.b16 %v33
    %v48 = vunpack.c.l.b16 %v34
    %v49 = vpack.c.b16 %v45, %v44
    %v50 = vpack.c.b16 %v47, %v46
    %v51 = vpack.c.b16 %v48, %v48
    %vm54 = vcmask 302080
    %v56 = vsel %vm54, %v29, 0
    %vm58 = vcmask 1041408
    %vm59 = vcmask 1042432
    %v60 = vsel %vm58, 4294967295, 65535
    %v61 = vsel %vm59, %v60, 0
    %v63 = vand.u32 %v51, %v61
    %65 = vmatpush.bf16.msra.mxu0 0
    %66 = vmatpush.bf16.msra.mxu0 0
    %67 = vmatpush.bf16.msra.mxu0 0
    %68 = vmatpush.bf16.msra.mxu0 0
    %69 = vmatpush.bf16.msra.mxu0 0
    %70 = vmatpush.bf16.msra.mxu0 %v63
    %71 = vmatpush.bf16.msra.mxu0 %v50
    %72 = vmatpush.bf16.msra.mxu0 %v49
    %73 = vmatmul.bf16.gmra.mxu0 %v56
    %v74 = vpop.f32.mrf.mxu0
    %v75 = vadd.f32 %v37, %v74
    %v76 = vpop.f32.mrf.mxu0
    %77 = vdwg.mxu0
    %v78 = vmax.f32 %v75, 0.0
    %v79 = vpack.c.bf16 %v78, %v78
    %v80 = vld [vmem:[%s3] sm:$0xf]
    %v81 = vld [vmem:[%s3 + $0x4] sm:$0xf]
    %v82 = vld [vmem:[%s3 + $0x8] sm:$0xf]
    %v83 = vld [vmem:[%s3 + $0xc] sm:$0xf]
    %v84 = vld [vmem:[%s4] sm:$0x1]
    %v86 = vperm.slane %v84, 0
    %v92 = vunpack.c.l.b16 %v80
    %v93 = vunpack.c.l.b16 %v81
    %v94 = vunpack.c.l.b16 %v82
    %v95 = vunpack.c.l.b16 %v83
    %v96 = vpack.c.b16 %v93, %v92
    %v97 = vpack.c.b16 %v95, %v94
    %vm100 = vcmask 261120
    %v102 = vsel %vm100, %v79, 0
    %104 = vmatpush.bf16.msra.mxu0 0
    %105 = vmatpush.bf16.msra.mxu0 0
    %106 = vmatpush.bf16.msra.mxu0 0
    %107 = vmatpush.bf16.msra.mxu0 0
    %108 = vmatpush.bf16.msra.mxu0 0
    %109 = vmatpush.bf16.msra.mxu0 0
    %110 = vmatpush.bf16.msra.mxu0 %v97
    %111 = vmatpush.bf16.msra.mxu0 %v96
    %112 = vmatmul.bf16.gmra.mxu0 %v102
    %v113 = vpop.f32.mrf.mxu0
    %v114 = vadd.f32 %v86, %v113
    %v115 = vpop.f32.mrf.mxu0
    %116 = vdwg.mxu0
    %v117 = vmax.f32 %v114, 0.0
    %v118 = vpack.c.bf16 %v117, %v117
    %v119 = vld [vmem:[%s5] sm:$0xf]
    %v120 = vld [vmem:[%s5 + $0x4] sm:$0xf]
    %v121 = vld [vmem:[%s5 + $0x8] sm:$0xf]
    %v122 = vld [vmem:[%s5 + $0xc] sm:$0xf]
    %v123 = vld [vmem:[%s6] sm:$0x1]
    %v125 = vperm.slane %v123, 0
    %v131 = vunpack.c.l.b16 %v119
    %v132 = vunpack.c.l.b16 %v120
    %v133 = vunpack.c.l.b16 %v121
    %v134 = vunpack.c.l.b16 %v122
    %v135 = vpack.c.b16 %v132, %v131
    %v136 = vpack.c.b16 %v134, %v133
    %v140 = vsel %vm100, %v118, 0
    %142 = vmatpush.bf16.msra.mxu0 0
    %143 = vmatpush.bf16.msra.mxu0 0
    %144 = vmatpush.bf16.msra.mxu0 0
    %145 = vmatpush.bf16.msra.mxu0 0
    %146 = vmatpush.bf16.msra.mxu0 0
    %147 = vmatpush.bf16.msra.mxu0 0
    %148 = vmatpush.bf16.msra.mxu0 %v136
    %149 = vmatpush.bf16.msra.mxu0 %v135
    %150 = vmatmul.bf16.gmra.mxu0 %v140
    %v151 = vpop.f32.mrf.mxu0
    %v152 = vadd.f32 %v125, %v151
    %v153 = vpop.f32.mrf.mxu0
    %154 = vdwg.mxu0
    %vm155 = vcmask 9216
    %156 = vst.msk [vmem:[#allocation2] sm:$0x3] %vm155, %v152
    // Predicated region
    $region30: #{trident_forward.7} parent=1 // pred_check
      _
    $region31: #{trident_forward.7} parent=1 // pred_check_branch
      %158 = sbr.rel (0) target = $region33
    $region32: #{trident_forward.7} parent=1 // pred_region
      %160 = vsyncadd [#allocation3], 0
      %s162 = sshll.u32 [#allocation2], 4
      %s163 = int_to_ptr.vmem [resolvable:$true] %s162
      %s164 = sshll.u32 %s7, 4
      %s165 = int_to_ptr.hbm [resolvable:$true] %s164
      %167 = dma.vmem_to_hbm [thread:$0]  %s163, 32, %s165, [#allocation3]
    $region33: #{trident_forward.7} parent=1 // pred_fallthru
      _
    // Predicated region
    $region34: #{trident_forward.7} parent=1 // pred_check
      _
    $region35: #{trident_forward.7} parent=1 // pred_check_branch
      %169 = sbr.rel (0) target = $region37
    $region36: #{trident_forward.7} parent=1 // pred_region
      %171 = dma.done [#allocation3], 32
    $region37: #{trident_forward.7} parent=1 // pred_fallthru
      _
    %172 = vsyncpa [#allocation3], 1

// kernel: trident_forward.5
$region0: #{trident_forward.5}
  #allocation0 [shape = 'u32[]', space=smem, size = 0x4, offset = 0x4, fixed_abs, tag = 'smem constant byte address 0x4 - core index']
  #allocation1 [shape = 'u32[72,128]{1,0:T(1,128)}', space=vmem, size = 0x9000, scoped, tag = 'internal scratch']
  %s0 = inlined_call_operand.vmem [shape: f32[16,32], index: 0, kind: input, shape index: {}]
  %s1 = inlined_call_operand.vmem [shape: f32[2,1,8], index: 1, kind: input, shape index: {}]
  %s2 = inlined_call_operand.vmem [shape: bf16[32,96], index: 2, kind: input, shape index: {}]
  %s3 = inlined_call_operand.vmem [shape: f32[1,96], index: 3, kind: input, shape index: {}]
  %s4 = inlined_call_operand.vmem [shape: bf16[32,32], index: 4, kind: input, shape index: {}]
  %s5 = inlined_call_operand.vmem [shape: f32[1,32], index: 5, kind: input, shape index: {}]
  %s6 = inlined_call_operand.vmem [shape: f32[1,32], index: 6, kind: input, shape index: {}]
  %s7 = inlined_call_operand.vmem [shape: f32[1,32], index: 7, kind: input, shape index: {}]
  %s8 = inlined_call_operand.vmem [shape: bf16[32,64], index: 8, kind: input, shape index: {}]
  %s9 = inlined_call_operand.vmem [shape: f32[1,64], index: 9, kind: input, shape index: {}]
  %s10 = inlined_call_operand.vmem [shape: bf16[64,32], index: 10, kind: input, shape index: {}]
  %s11 = inlined_call_operand.vmem [shape: f32[1,32], index: 11, kind: input, shape index: {}]
  %s12 = inlined_call_operand.vmem [shape: f32[1,32], index: 12, kind: input, shape index: {}]
  %s13 = inlined_call_operand.vmem [shape: f32[1,32], index: 13, kind: input, shape index: {}]
  %s14 = inlined_call_operand.vmem [shape: f32[16,32], index: 14, kind: output, shape index: {}]
  %s15 = sld [smem:[#allocation0]]
  $region89: #{trident_forward.5} parent=0
    _
  %s17 = ssub.s32 1, %s15
  %s18 = scalar_select 0, %s17, %s15
  loop: start=0, step=1, limit=4
  $region2: #{trident_forward.5} parent=0 // loop_pre_header
    _
  $region3: #{trident_forward.5} parent=0 // loop_header
    %s20 = sphi 0, %s24
    %p21 = scmp.ge.s32.totalorder %s20, 4
    %s30 = sphi 0, %s32
    %s33 = sphi 0, %s30
    %s34 = sphi 0, %s33
    %s50 = sphi 0, %s34
    %s56 = sphi 0, %s58
    %s59 = sphi 0, %s56
    %s60 = sphi 0, %s59
    %s76 = sphi 0, %s60
    %s80 = sphi 0, %s80
    %s82 = sphi 0, %s80
    %s83 = sphi 0, %s82
    %s97 = sphi 0, %s83
    %s101 = sphi 0, %s101
    %s103 = sphi 0, %s101
    %s104 = sphi 0, %s103
    %s118 = sphi 0, %s104
    %s122 = sphi 0, %s122
    %s124 = sphi 0, %s122
    %s125 = sphi 0, %s124
    %s139 = sphi 0, %s125
    %s143 = sphi 0, %s143
    %s145 = sphi 0, %s143
    %s146 = sphi 0, %s145
    %s160 = sphi 0, %s146
    %s164 = sphi 0, %s164
    %s166 = sphi 0, %s164
    %s167 = sphi 0, %s166
    %s181 = sphi 0, %s167
    %s185 = sphi 0, %s185
    %s187 = sphi 0, %s185
    %s188 = sphi 0, %s187
    %s202 = sphi 0, %s188
    %s206 = sphi 0, %s206
    %s208 = sphi 0, %s206
    %s209 = sphi 0, %s208
    %s223 = sphi 0, %s209
    %s227 = sphi 0, %s227
    %s229 = sphi 0, %s227
    %s230 = sphi 0, %s229
    %s244 = sphi 0, %s230
    %s248 = sphi 0, %s248
    %s250 = sphi 0, %s248
    %s251 = sphi 0, %s250
    %s265 = sphi 0, %s251
    %s269 = sphi 0, %s269
    %s271 = sphi 0, %s269
    %s272 = sphi 0, %s271
    %s286 = sphi 0, %s272
    %s290 = sphi 0, %s290
    %s292 = sphi 0, %s290
    %s293 = sphi 0, %s292
    %s307 = sphi 0, %s293
    %s311 = sphi 0, %s311
    %s313 = sphi 0, %s311
    %s314 = sphi 0, %s313
    %s328 = sphi 0, %s314
    %s334 = sphi 0, %s336
    %s337 = sphi 0, %s334
    %s338 = sphi 0, %s337
    %s354 = sphi 0, %s338
  $region4: #{trident_forward.5} parent=0 // loop_header_branch
    %23 = sbr.rel (%p21) target = $region8
  $region5: #{trident_forward.5} parent=0 // loop_body
    %s25 = ssub.s32 %s20, 1
    %s26 = ssub.s32 %s20, 2
    %s27 = sadd.s32 %s20, 1
    %s28 = ssub.s32 %s20, %s27
    %p29 = scmp.eq.s32.totalorder %s28, 0
    %s31 = sadd.s32 %s30, 1
    %s32 = scalar_select %p29, %s30, %s31
    %p35 = pneg %p29
    %p36 = scmp.eq.s32.totalorder %s20, 1
    %p37 = por %p35, %p36
    %p38 = scmp.ne.s32.totalorder %s30, %s33
    %p39 = scmp.eq.s32.totalorder %s20, 0
    %p40 = por %p38, %p39
    %p41 = scmp.ne.s32.totalorder %s30, %s33
    %p42 = scmp.eq.s32.totalorder %s25, 1
    %p43 = por %p41, %p42
    %p44 = scmp.ne.s32.totalorder %s33, %s34
    %p45 = scmp.eq.s32.totalorder %s25, 0
    %p46 = por %p44, %p45
    %p47 = scmp.ne.s32.totalorder %s33, %s34
    %p48 = scmp.eq.s32.totalorder %s26, 1
    %p49 = por %p47, %p48
    %p51 = scmp.ne.s32.totalorder %s34, %s50
    %p52 = scmp.eq.s32.totalorder %s26, 0
    %p53 = por %p51, %p52
    %s54 = ssub.s32 %s20, %s27
    %p55 = scmp.eq.s32.totalorder %s54, 0
    %s57 = sadd.s32 %s56, 1
    %s58 = scalar_select %p55, %s56, %s57
    %p61 = pneg %p55
    %p62 = scmp.eq.s32.totalorder %s20, 1
    %p63 = por %p61, %p62
    %p64 = scmp.ne.s32.totalorder %s56, %s59
    %p65 = scmp.eq.s32.totalorder %s20, 0
    %p66 = por %p64, %p65
    %p67 = scmp.ne.s32.totalorder %s56, %s59
    %p68 = scmp.eq.s32.totalorder %s25, 1
    %p69 = por %p67, %p68
    %p70 = scmp.ne.s32.totalorder %s59, %s60
    %p71 = scmp.eq.s32.totalorder %s25, 0
    %p72 = por %p70, %p71
    %p73 = scmp.ne.s32.totalorder %s59, %s60
    %p74 = scmp.eq.s32.totalorder %s26, 1
    %p75 = por %p73, %p74
    %p77 = scmp.ne.s32.totalorder %s60, %s76
    %p78 = scmp.eq.s32.totalorder %s26, 0
    %p79 = por %p77, %p78
    %s81 = sadd.s32 %s80, 1
    %p84 = scmp.eq.s32.totalorder %s20, 1
    %p85 = scmp.ne.s32.totalorder %s80, %s82
    %p86 = scmp.eq.s32.totalorder %s20, 0
    %p87 = por %p85, %p86
    %p88 = scmp.ne.s32.totalorder %s80, %s82
    %p89 = scmp.eq.s32.totalorder %s25, 1
    %p90 = por %p88, %p89
    %p91 = scmp.ne.s32.totalorder %s82, %s83
    %p92 = scmp.eq.s32.totalorder %s25, 0
    %p93 = por %p91, %p92
    %p94 = scmp.ne.s32.totalorder %s82, %s83
    %p95 = scmp.eq.s32.totalorder %s26, 1
    %p96 = por %p94, %p95
    %p98 = scmp.ne.s32.totalorder %s83, %s97
    %p99 = scmp.eq.s32.totalorder %s26, 0
    %p100 = por %p98, %p99
    %s102 = sadd.s32 %s101, 1
    %p105 = scmp.eq.s32.totalorder %s20, 1
    %p106 = scmp.ne.s32.totalorder %s101, %s103
    %p107 = scmp.eq.s32.totalorder %s20, 0
    %p108 = por %p106, %p107
    %p109 = scmp.ne.s32.totalorder %s101, %s103
    %p110 = scmp.eq.s32.totalorder %s25, 1
    %p111 = por %p109, %p110
    %p112 = scmp.ne.s32.totalorder %s103, %s104
    %p113 = scmp.eq.s32.totalorder %s25, 0
    %p114 = por %p112, %p113
    %p115 = scmp.ne.s32.totalorder %s103, %s104
    %p116 = scmp.eq.s32.totalorder %s26, 1
    %p117 = por %p115, %p116
    %p119 = scmp.ne.s32.totalorder %s104, %s118
    %p120 = scmp.eq.s32.totalorder %s26, 0
    %p121 = por %p119, %p120
    %s123 = sadd.s32 %s122, 1
    %p126 = scmp.eq.s32.totalorder %s20, 1
    %p127 = scmp.ne.s32.totalorder %s122, %s124
    %p128 = scmp.eq.s32.totalorder %s20, 0
    %p129 = por %p127, %p128
    %p130 = scmp.ne.s32.totalorder %s122, %s124
    %p131 = scmp.eq.s32.totalorder %s25, 1
    %p132 = por %p130, %p131
    %p133 = scmp.ne.s32.totalorder %s124, %s125
    %p134 = scmp.eq.s32.totalorder %s25, 0
    %p135 = por %p133, %p134
    %p136 = scmp.ne.s32.totalorder %s124, %s125
    %p137 = scmp.eq.s32.totalorder %s26, 1
    %p138 = por %p136, %p137
    %p140 = scmp.ne.s32.totalorder %s125, %s139
    %p141 = scmp.eq.s32.totalorder %s26, 0
    %p142 = por %p140, %p141
    %s144 = sadd.s32 %s143, 1
    %p147 = scmp.eq.s32.totalorder %s20, 1
    %p148 = scmp.ne.s32.totalorder %s143, %s145
    %p149 = scmp.eq.s32.totalorder %s20, 0
    %p150 = por %p148, %p149
    %p151 = scmp.ne.s32.totalorder %s143, %s145
    %p152 = scmp.eq.s32.totalorder %s25, 1
    %p153 = por %p151, %p152
    %p154 = scmp.ne.s32.totalorder %s145, %s146
    %p155 = scmp.eq.s32.totalorder %s25, 0
    %p156 = por %p154, %p155
    %p157 = scmp.ne.s32.totalorder %s145, %s146
    %p158 = scmp.eq.s32.totalorder %s26, 1
    %p159 = por %p157, %p158
    %p161 = scmp.ne.s32.totalorder %s146, %s160
    %p162 = scmp.eq.s32.totalorder %s26, 0
    %p163 = por %p161, %p162
    %s165 = sadd.s32 %s164, 1
    %p168 = scmp.eq.s32.totalorder %s20, 1
    %p169 = scmp.ne.s32.totalorder %s164, %s166
    %p170 = scmp.eq.s32.totalorder %s20, 0
    %p171 = por %p169, %p170
    %p172 = scmp.ne.s32.totalorder %s164, %s166
    %p173 = scmp.eq.s32.totalorder %s25, 1
    %p174 = por %p172, %p173
    %p175 = scmp.ne.s32.totalorder %s166, %s167
    %p176 = scmp.eq.s32.totalorder %s25, 0
    %p177 = por %p175, %p176
    %p178 = scmp.ne.s32.totalorder %s166, %s167
    %p179 = scmp.eq.s32.totalorder %s26, 1
    %p180 = por %p178, %p179
    %p182 = scmp.ne.s32.totalorder %s167, %s181
    %p183 = scmp.eq.s32.totalorder %s26, 0
    %p184 = por %p182, %p183
    %s186 = sadd.s32 %s185, 1
    %p189 = scmp.eq.s32.totalorder %s20, 1
    %p190 = scmp.ne.s32.totalorder %s185, %s187
    %p191 = scmp.eq.s32.totalorder %s20, 0
    %p192 = por %p190, %p191
    %p193 = scmp.ne.s32.totalorder %s185, %s187
    %p194 = scmp.eq.s32.totalorder %s25, 1
    %p195 = por %p193, %p194
    %p196 = scmp.ne.s32.totalorder %s187, %s188
    %p197 = scmp.eq.s32.totalorder %s25, 0
    %p198 = por %p196, %p197
    %p199 = scmp.ne.s32.totalorder %s187, %s188
    %p200 = scmp.eq.s32.totalorder %s26, 1
    %p201 = por %p199, %p200
    %p203 = scmp.ne.s32.totalorder %s188, %s202
    %p204 = scmp.eq.s32.totalorder %s26, 0
    %p205 = por %p203, %p204
    %s207 = sadd.s32 %s206, 1
    %p210 = scmp.eq.s32.totalorder %s20, 1
    %p211 = scmp.ne.s32.totalorder %s206, %s208
    %p212 = scmp.eq.s32.totalorder %s20, 0
    %p213 = por %p211, %p212
    %p214 = scmp.ne.s32.totalorder %s206, %s208
    %p215 = scmp.eq.s32.totalorder %s25, 1
    %p216 = por %p214, %p215
    %p217 = scmp.ne.s32.totalorder %s208, %s209
    %p218 = scmp.eq.s32.totalorder %s25, 0
    %p219 = por %p217, %p218
    %p220 = scmp.ne.s32.totalorder %s208, %s209
    %p221 = scmp.eq.s32.totalorder %s26, 1
    %p222 = por %p220, %p221
    %p224 = scmp.ne.s32.totalorder %s209, %s223
    %p225 = scmp.eq.s32.totalorder %s26, 0
    %p226 = por %p224, %p225
    %s228 = sadd.s32 %s227, 1
    %p231 = scmp.eq.s32.totalorder %s20, 1
    %p232 = scmp.ne.s32.totalorder %s227, %s229
    %p233 = scmp.eq.s32.totalorder %s20, 0
    %p234 = por %p232, %p233
    %p235 = scmp.ne.s32.totalorder %s227, %s229
    %p236 = scmp.eq.s32.totalorder %s25, 1
    %p237 = por %p235, %p236
    %p238 = scmp.ne.s32.totalorder %s229, %s230
    %p239 = scmp.eq.s32.totalorder %s25, 0
    %p240 = por %p238, %p239
    %p241 = scmp.ne.s32.totalorder %s229, %s230
    %p242 = scmp.eq.s32.totalorder %s26, 1
    %p243 = por %p241, %p242
    %p245 = scmp.ne.s32.totalorder %s230, %s244
    %p246 = scmp.eq.s32.totalorder %s26, 0
    %p247 = por %p245, %p246
    %s249 = sadd.s32 %s248, 1
    %p252 = scmp.eq.s32.totalorder %s20, 1
    %p253 = scmp.ne.s32.totalorder %s248, %s250
    %p254 = scmp.eq.s32.totalorder %s20, 0
    %p255 = por %p253, %p254
    %p256 = scmp.ne.s32.totalorder %s248, %s250
    %p257 = scmp.eq.s32.totalorder %s25, 1
    %p258 = por %p256, %p257
    %p259 = scmp.ne.s32.totalorder %s250, %s251
    %p260 = scmp.eq.s32.totalorder %s25, 0
    %p261 = por %p259, %p260
    %p262 = scmp.ne.s32.totalorder %s250, %s251
    %p263 = scmp.eq.s32.totalorder %s26, 1
    %p264 = por %p262, %p263
    %p266 = scmp.ne.s32.totalorder %s251, %s265
    %p267 = scmp.eq.s32.totalorder %s26, 0
    %p268 = por %p266, %p267
    %s270 = sadd.s32 %s269, 1
    %p273 = scmp.eq.s32.totalorder %s20, 1
    %p274 = scmp.ne.s32.totalorder %s269, %s271
    %p275 = scmp.eq.s32.totalorder %s20, 0
    %p276 = por %p274, %p275
    %p277 = scmp.ne.s32.totalorder %s269, %s271
    %p278 = scmp.eq.s32.totalorder %s25, 1
    %p279 = por %p277, %p278
    %p280 = scmp.ne.s32.totalorder %s271, %s272
    %p281 = scmp.eq.s32.totalorder %s25, 0
    %p282 = por %p280, %p281
    %p283 = scmp.ne.s32.totalorder %s271, %s272
    %p284 = scmp.eq.s32.totalorder %s26, 1
    %p285 = por %p283, %p284
    %p287 = scmp.ne.s32.totalorder %s272, %s286
    %p288 = scmp.eq.s32.totalorder %s26, 0
    %p289 = por %p287, %p288
    %s291 = sadd.s32 %s290, 1
    %p294 = scmp.eq.s32.totalorder %s20, 1
    %p295 = scmp.ne.s32.totalorder %s290, %s292
    %p296 = scmp.eq.s32.totalorder %s20, 0
    %p297 = por %p295, %p296
    %p298 = scmp.ne.s32.totalorder %s290, %s292
    %p299 = scmp.eq.s32.totalorder %s25, 1
    %p300 = por %p298, %p299
    %p301 = scmp.ne.s32.totalorder %s292, %s293
    %p302 = scmp.eq.s32.totalorder %s25, 0
    %p303 = por %p301, %p302
    %p304 = scmp.ne.s32.totalorder %s292, %s293
    %p305 = scmp.eq.s32.totalorder %s26, 1
    %p306 = por %p304, %p305
    %p308 = scmp.ne.s32.totalorder %s293, %s307
    %p309 = scmp.eq.s32.totalorder %s26, 0
    %p310 = por %p308, %p309
    %s312 = sadd.s32 %s311, 1
    %p315 = scmp.eq.s32.totalorder %s20, 1
    %p316 = scmp.ne.s32.totalorder %s311, %s313
    %p317 = scmp.eq.s32.totalorder %s20, 0
    %p318 = por %p316, %p317
    %p319 = scmp.ne.s32.totalorder %s311, %s313
    %p320 = scmp.eq.s32.totalorder %s25, 1
    %p321 = por %p319, %p320
    %p322 = scmp.ne.s32.totalorder %s313, %s314
    %p323 = scmp.eq.s32.totalorder %s25, 0
    %p324 = por %p322, %p323
    %p325 = scmp.ne.s32.totalorder %s313, %s314
    %p326 = scmp.eq.s32.totalorder %s26, 1
    %p327 = por %p325, %p326
    %p329 = scmp.ne.s32.totalorder %s314, %s328
    %p330 = scmp.eq.s32.totalorder %s26, 0
    %p331 = por %p329, %p330
    %s332 = ssub.s32 %s20, %s27
    %p333 = scmp.eq.s32.totalorder %s332, 0
    %s335 = sadd.s32 %s334, 1
    %s336 = scalar_select %p333, %s334, %s335
    %p339 = pneg %p333
    %p340 = scmp.eq.s32.totalorder %s20, 1
    %p341 = por %p339, %p340
    %p342 = scmp.ne.s32.totalorder %s334, %s337
    %p343 = scmp.eq.s32.totalorder %s20, 0
    %p344 = por %p342, %p343
    %p345 = scmp.ne.s32.totalorder %s334, %s337
    %p346 = scmp.eq.s32.totalorder %s25, 1
    %p347 = por %p345, %p346
    %p348 = scmp.ne.s32.totalorder %s337, %s338
    %p349 = scmp.eq.s32.totalorder %s25, 0
    %p350 = por %p348, %p349
    %p351 = scmp.ne.s32.totalorder %s337, %s338
    %p352 = scmp.eq.s32.totalorder %s26, 1
    %p353 = por %p351, %p352
    %p355 = scmp.ne.s32.totalorder %s338, %s354
    %p356 = scmp.eq.s32.totalorder %s26, 0
    %p357 = por %p355, %p356
    %p358 = scmp.le.s32.totalorder 1, %s20
    %p359 = scmp.lt.s32.totalorder %s20, 3
    %p360 = pnand %p358, %p359
    %p361 = pneg %p360
    // Predicated region
    $region9: #{trident_forward.5} parent=5 // pred_check
      _
    $region10: #{trident_forward.5} parent=5 // pred_check_branch
      %363 = sbr.rel (%p360) target = $region12
    $region11: #{trident_forward.5} parent=5 // pred_region
      %s364 = ssub.s32 %s20, 1
      // Predicated region
      $region13: #{trident_forward.5} parent=11 // pred_check
        %p365 = pneg %p93
      $region14: #{trident_forward.5} parent=11 // pred_check_branch
        %367 = sbr.rel (%p365) target = $region16
      $region15: #{trident_forward.5} parent=11 // pred_region
        _
      $region16: #{trident_forward.5} parent=11 // pred_fallthru
        _
      // Predicated region
      $region17: #{trident_forward.5} parent=11 // pred_check
        %p368 = pneg %p114
      $region18: #{trident_forward.5} parent=11 // pred_check_branch
        %370 = sbr.rel (%p368) target = $region20
      $region19: #{trident_forward.5} parent=11 // pred_region
        _
      $region20: #{trident_forward.5} parent=11 // pred_fallthru
        _
      // Predicated region
      $region21: #{trident_forward.5} parent=11 // pred_check
        %p371 = pneg %p135
      $region22: #{trident_forward.5} parent=11 // pred_check_branch
        %373 = sbr.rel (%p371) target = $region24
      $region23: #{trident_forward.5} parent=11 // pred_region
        _
      $region24: #{trident_forward.5} parent=11 // pred_fallthru
        _
      // Predicated region
      $region25: #{trident_forward.5} parent=11 // pred_check
        %p374 = pneg %p156
      $region26: #{trident_forward.5} parent=11 // pred_check_branch
        %376 = sbr.rel (%p374) target = $region28
      $region27: #{trident_forward.5} parent=11 // pred_region
        _
      $region28: #{trident_forward.5} parent=11 // pred_fallthru
        _
      // Predicated region
      $region29: #{trident_forward.5} parent=11 // pred_check
        %p377 = pneg %p177
      $region30: #{trident_forward.5} parent=11 // pred_check_branch
        %379 = sbr.rel (%p377) target = $region32
      $region31: #{trident_forward.5} parent=11 // pred_region
        _
      $region32: #{trident_forward.5} parent=11 // pred_fallthru
        _
      // Predicated region
      $region33: #{trident_forward.5} parent=11 // pred_check
        %p380 = pneg %p198
      $region34: #{trident_forward.5} parent=11 // pred_check_branch
        %382 = sbr.rel (%p380) target = $region36
      $region35: #{trident_forward.5} parent=11 // pred_region
        _
      $region36: #{trident_forward.5} parent=11 // pred_fallthru
        _
      // Predicated region
      $region37: #{trident_forward.5} parent=11 // pred_check
        %p383 = pneg %p219
      $region38: #{trident_forward.5} parent=11 // pred_check_branch
        %385 = sbr.rel (%p383) target = $region40
      $region39: #{trident_forward.5} parent=11 // pred_region
        _
      $region40: #{trident_forward.5} parent=11 // pred_fallthru
        _
      // Predicated region
      $region41: #{trident_forward.5} parent=11 // pred_check
        %p386 = pneg %p240
      $region42: #{trident_forward.5} parent=11 // pred_check_branch
        %388 = sbr.rel (%p386) target = $region44
      $region43: #{trident_forward.5} parent=11 // pred_region
        _
      $region44: #{trident_forward.5} parent=11 // pred_fallthru
        _
      // Predicated region
      $region45: #{trident_forward.5} parent=11 // pred_check
        %p389 = pneg %p261
      $region46: #{trident_forward.5} parent=11 // pred_check_branch
        %391 = sbr.rel (%p389) target = $region48
      $region47: #{trident_forward.5} parent=11 // pred_region
        _
      $region48: #{trident_forward.5} parent=11 // pred_fallthru
        _
      // Predicated region
      $region49: #{trident_forward.5} parent=11 // pred_check
        %p392 = pneg %p282
      $region50: #{trident_forward.5} parent=11 // pred_check_branch
        %394 = sbr.rel (%p392) target = $region52
      $region51: #{trident_forward.5} parent=11 // pred_region
        _
      $region52: #{trident_forward.5} parent=11 // pred_fallthru
        _
      // Predicated region
      $region53: #{trident_forward.5} parent=11 // pred_check
        %p395 = pneg %p303
      $region54: #{trident_forward.5} parent=11 // pred_check_branch
        %397 = sbr.rel (%p395) target = $region56
      $region55: #{trident_forward.5} parent=11 // pred_region
        _
      $region56: #{trident_forward.5} parent=11 // pred_fallthru
        _
      // Predicated region
      $region57: #{trident_forward.5} parent=11 // pred_check
        %p398 = pneg %p324
      $region58: #{trident_forward.5} parent=11 // pred_check_branch
        %400 = sbr.rel (%p398) target = $region60
      $region59: #{trident_forward.5} parent=11 // pred_region
        _
      $region60: #{trident_forward.5} parent=11 // pred_fallthru
        _
    $region12: #{trident_forward.5} parent=5 // pred_fallthru
      _
    %p401 = scmp.lt.s32.totalorder %s20, 2
    // Predicated region
    $region61: #{trident_forward.5} parent=5 // pred_check
      %p402 = pneg %p401
    $region62: #{trident_forward.5} parent=5 // pred_check_branch
      %404 = sbr.rel (%p402) target = $region64
    $region63: #{trident_forward.5} parent=5 // pred_region
      // Predicated region
      $region65: #{trident_forward.5} parent=63 // pred_check
        %p405 = pneg %p40
      $region66: #{trident_forward.5} parent=63 // pred_check_branch
        %407 = sbr.rel (%p405) target = $region68
      $region67: #{trident_forward.5} parent=63 // pred_region
        %p408 = scmp.lt.s32.totalorder %s20, 1
        %s409 = scalar_select %p408, %s20, 1
        %s410 = smul.addr %s409, 8
        %s411 = scalar_lea.vmem %s0, %s410
      $region68: #{trident_forward.5} parent=63 // pred_fallthru
        _
      // Predicated region
      $region69: #{trident_forward.5} parent=63 // pred_check
        %p412 = pneg %p66
      $region70: #{trident_forward.5} parent=63 // pred_check_branch
        %414 = sbr.rel (%p412) target = $region72
      $region71: #{trident_forward.5} parent=63 // pred_region
        %p415 = scmp.lt.s32.totalorder %s20, 1
        %s416 = scalar_select %p415, %s20, 1
        %s417 = scalar_lea.vmem %s1, %s416
      $region72: #{trident_forward.5} parent=63 // pred_fallthru
        _
    $region64: #{trident_forward.5} parent=5 // pred_fallthru
      _
    %p418 = scmp.le.s32.totalorder 1, %s20
    %p419 = scmp.lt.s32.totalorder %s20, 3
    %p420 = pnand %p418, %p419
    %p421 = pneg %p420
    // Predicated region
    $region73: #{trident_forward.5} parent=5 // pred_check
      _
    $region74: #{trident_forward.5} parent=5 // pred_check_branch
      %423 = sbr.rel (%p420) target = $region76
    $region75: #{trident_forward.5} parent=5 // pred_region
      %s424 = ssub.s32 %s20, 1
      %p425 = scmp.lt.s32.totalorder %s25, 1
      %s426 = scalar_select %p425, %s25, 1
      %s427 = smul.addr %s426, 8
      %s428 = scalar_lea.vmem %s0, %s427
      %p429 = pneg %p46
      %p430 = pneg %p43
      %p431 = scmp.lt.s32.totalorder %s25, 1
      %s432 = scalar_select %p431, %s25, 1
      %s433 = scalar_lea.vmem %s1, %s432
      %p434 = pneg %p72
      %p435 = pneg %p69
      %p436 = pneg %p93
      %p437 = pneg %p90
      %p438 = pneg %p114
      %p439 = pneg %p111
      %p440 = pneg %p135
      %p441 = pneg %p132
      %p442 = pneg %p156
      %p443 = pneg %p153
      %p444 = pneg %p177
      %p445 = pneg %p174
      %p446 = pneg %p198
      %p447 = pneg %p195
      %p448 = pneg %p219
      %p449 = pneg %p216
      %p450 = pneg %p240
      %p451 = pneg %p237
      %p452 = pneg %p261
      %p453 = pneg %p258
      %p454 = pneg %p282
      %p455 = pneg %p279
      %p456 = pneg %p303
      %p457 = pneg %p300
      %p458 = pneg %p324
      %p459 = pneg %p321
      %p460 = pneg %p350
      %p461 = pneg %p347
      %p462 = scmp.lt.s32.totalorder %s25, 1
      %s463 = scalar_select %p462, %s25, 1
      %s464 = smul.addr %s463, 8
      %s465 = scalar_lea.vmem %s14, %s464
      %p466 = scmp.lt.s32.totalorder %s25, 1
      %s467 = scalar_select %p466, %s25, 1
      %s468 = smul.addr %s467, 8
      %s469 = scalar_lea.vmem %s0, %s468
      %p470 = scmp.lt.s32.totalorder %s25, 1
      %s471 = scalar_select %p470, %s25, 1
      %s472 = scalar_lea.vmem %s1, %s471
      %p473 = scmp.lt.s32.totalorder %s25, 1
      %s474 = scalar_select %p473, %s25, 1
      %s475 = smul.addr %s474, 8
      %s476 = scalar_lea.vmem %s14, %s475
      %v478 = vld [vmem:[%s469] sm:$0xff]
      %v479 = vpack.c.bf16 %v478, %v478
      %v480 = vld [vmem:[%s2] sm:$0xf]
      %v481 = vld [vmem:[%s2 + $0x4] sm:$0xf]
      %v482 = vld [vmem:[%s2 + $0x8] sm:$0xf]
      %v483 = vld [vmem:[%s2 + $0xc] sm:$0xf]
      %v484 = vld [vmem:[%s3] sm:$0x1]
      %v486 = vperm.slane %v484, 0
      %v492 = vunpack.c.l.b16 %v480
      %v493 = vunpack.c.l.b16 %v481
      %v494 = vunpack.c.l.b16 %v482
      %v495 = vunpack.c.l.b16 %v483
      %v496 = vpack.c.b16 %v493, %v492
      %v497 = vpack.c.b16 %v495, %v494
      %vm500 = vcmask 261120
      %v502 = vsel %vm500, %v479, 0
      %504 = vmatpush.bf16.msra.mxu0 0
      %505 = vmatpush.bf16.msra.mxu0 0
      %506 = vmatpush.bf16.msra.mxu0 0
      %507 = vmatpush.bf16.msra.mxu0 0
      %508 = vmatpush.bf16.msra.mxu0 0
      %509 = vmatpush.bf16.msra.mxu0 0
      %510 = vmatpush.bf16.msra.mxu0 %v497
      %511 = vmatpush.bf16.msra.mxu0 %v496
      %512 = vmatmul.bf16.gmra.mxu0 %v502
      %v513 = vpop.f32.mrf.mxu0
      %v514 = vadd.f32 %v486, %v513
      %v515 = vpop.f32.mrf.mxu0
      %516 = vdwg.mxu0
      %518 = vrot.lane.b32.xlu0 %v514, 112
      %v519 = vpop.permute.xlu0 %518
      %v521 = vpack.c.bf16 %v514, %v514
      %v522 = vpack.c.bf16 %v519, %v519
      %v523 = vld [vmem:[%s472] sm:$0x1]
      %v525 = vperm.slane %v523, 0
      %v528 = vunpack.c.l.b16 %v521
      %v529 = vpack.c.b16 %v528, %v528
      %530 = vrot.lane.b32.xlu0 %v529, 96
      %v531 = vpop.permute.xlu0 %530
      %vm532 = vcmask 130048
      %v534 = vsel %vm532, %v521, 0
      %v537 = vsel %vm532, %v531, 0
      %539 = vmatpush.bf16.xpose.msra.mxu0 0
      %540 = vmatpush.bf16.xpose.msra.mxu0 0
      %541 = vmatpush.bf16.xpose.msra.mxu0 0
      %542 = vmatpush.bf16.xpose.msra.mxu0 0
      %543 = vmatpush.bf16.xpose.msra.mxu0 0
      %544 = vmatpush.bf16.xpose.msra.mxu0 0
      %545 = vmatpush.bf16.xpose.msra.mxu0 0
      %546 = vmatpush.bf16.xpose.msra.mxu0 %v537
      %547 = vmatmul.bf16.gmra.mxu0 %v534
      %v548 = vpop.f32.mrf.mxu0
      %v549 = vadd.f32 %v525, %v548
      %v550 = vpop.f32.mrf.mxu0
      %551 = vdwg.mxu0
      %v553 = vunpack.c.l.b16 %v522
      %v554 = vpack.c.b16 %v553, %v553
      %555 = vrot.lane.b32.xlu0 %v554, 96
      %v556 = vpop.permute.xlu0 %555
      %v558 = vsel %vm532, %v522, 0
      %v561 = vsel %vm532, %v556, 0
      %563 = vmatpush.bf16.xpose.msra.mxu0 0
      %564 = vmatpush.bf16.xpose.msra.mxu0 0
      %565 = vmatpush.bf16.xpose.msra.mxu0 0
      %566 = vmatpush.bf16.xpose.msra.mxu0 0
      %567 = vmatpush.bf16.xpose.msra.mxu0 0
      %568 = vmatpush.bf16.xpose.msra.mxu0 0
      %569 = vmatpush.bf16.xpose.msra.mxu0 0
      %570 = vmatpush.bf16.xpose.msra.mxu0 %v561
      %571 = vmatmul.bf16.gmra.mxu0 %v558
      %v572 = vpop.f32.mrf.mxu0
      %v573 = vadd.f32 %v525, %v572
      %v574 = vpop.f32.mrf.mxu0
      %575 = vdwg.mxu0
      %vm576 = vcmask 64512
      %v577 = vsel %vm576, %v549, -inf
      %578 = vmax.xlane.f32.xlu0 %v577
      %v579 = vpop.xlane.xlu0 %578
      %v580 = vsel %vm576, %v573, -inf
      %581 = vmax.xlane.f32.xlu0 %v580
      %v582 = vpop.xlane.xlu0 %581
      %v583 = vsub.f32 %v549, %v579
      %v584 = vsub.f32 %v573, %v582
      %v585 = vmul.f32 %v583, 1.442695
      %v586 = vpow.pop %v585
      %v587 = vmul.f32 %v584, 1.442695
      %v588 = vpow.pop %v587
      %v589 = vsel %vm576, %v586, 0.0
      %590 = vadd.xlane.f32.xlu0 %v589
      %v591 = vpop.xlane.xlu0 %590
      %v592 = vsel %vm576, %v588, 0.0
      %593 = vadd.xlane.f32.xlu0 %v592
      %v594 = vpop.xlane.xlu0 %593
      %v595 = vrcp.pop %v591
      %v596 = vrcp.pop %v594
      %v597 = vmul.f32 %v586, %v595
      %v598 = vmul.f32 %v588, %v596
      %v599 = vpack.c.bf16 %v597, %v597
      %v600 = vpack.c.bf16 %v598, %v598
      %601 = vrot.lane.b32.xlu0 %v529, 64
      %v602 = vpop.permute.xlu0 %601
      %v604 = vsel %vm576, %v599, 0
      %vm606 = vcmask 1043456
      %v608 = vsel %vm606, %v602, 0
      %610 = vmatpush.bf16.msra.mxu0 0
      %611 = vmatpush.bf16.msra.mxu0 0
      %612 = vmatpush.bf16.msra.mxu0 0
      %613 = vmatpush.bf16.msra.mxu0 0
      %614 = vmatpush.bf16.msra.mxu0 0
      %615 = vmatpush.bf16.msra.mxu0 0
      %616 = vmatpush.bf16.msra.mxu0 0
      %617 = vmatpush.bf16.msra.mxu0 %v608
      %618 = vmatmul.bf16.gmra.mxu0 %v604
      %v619 = vpop.f32.mrf.mxu0
      %v620 = vadd.f32 0.0, %v619
      %v621 = vpop.f32.mrf.mxu0
      %622 = vdwg.mxu0
      %623 = vrot.lane.b32.xlu0 %v554, 64
      %v624 = vpop.permute.xlu0 %623
      %v626 = vsel %vm576, %v600, 0
      %v629 = vsel %vm606, %v624, 0
      %631 = vmatpush.bf16.msra.mxu0 0
      %632 = vmatpush.bf16.msra.mxu0 0
      %633 = vmatpush.bf16.msra.mxu0 0
      %634 = vmatpush.bf16.msra.mxu0 0
      %635 = vmatpush.bf16.msra.mxu0 0
      %636 = vmatpush.bf16.msra.mxu0 0
      %637 = vmatpush.bf16.msra.mxu0 0
      %638 = vmatpush.bf16.msra.mxu0 %v629
      %639 = vmatmul.bf16.gmra.mxu0 %v626
      %v640 = vpop.f32.mrf.mxu0
      %v641 = vadd.f32 0.0, %v640
      %v642 = vpop.f32.mrf.mxu0
      %643 = vdwg.mxu0
      %645 = vrot.lane.b32.xlu0 %v641, 16
      %v646 = vpop.permute.xlu0 %645
      %v648 = vsel %vm532, %v620, %v646
      %v649 = vpack.c.bf16 %v648, %v648
      %v650 = vld [vmem:[%s4] sm:$0xf]
      %v651 = vld [vmem:[%s4 + $0x4] sm:$0xf]
      %v652 = vld [vmem:[%s4 + $0x8] sm:$0xf]
      %v653 = vld [vmem:[%s4 + $0xc] sm:$0xf]
      %v654 = vld [vmem:[%s5] sm:$0x1]
      %v656 = vperm.slane %v654, 0
      %v662 = vunpack.c.l.b16 %v650
      %v663 = vunpack.c.l.b16 %v651
      %v664 = vunpack.c.l.b16 %v652
      %v665 = vunpack.c.l.b16 %v653
      %v666 = vpack.c.b16 %v663, %v662
      %v667 = vpack.c.b16 %v665, %v664
      %v671 = vsel %vm500, %v649, 0
      %673 = vmatpush.bf16.msra.mxu0 0
      %674 = vmatpush.bf16.msra.mxu0 0
      %675 = vmatpush.bf16.msra.mxu0 0
      %676 = vmatpush.bf16.msra.mxu0 0
      %677 = vmatpush.bf16.msra.mxu0 0
      %678 = vmatpush.bf16.msra.mxu0 0
      %679 = vmatpush.bf16.msra.mxu0 %v667
      %680 = vmatpush.bf16.msra.mxu0 %v666
      %681 = vmatmul.bf16.gmra.mxu0 %v671
      %v682 = vpop.f32.mrf.mxu0
      %v683 = vadd.f32 %v656, %v682
      %v684 = vpop.f32.mrf.mxu0
      %685 = vdwg.mxu0
      %v686 = vadd.f32 %v478, %v683
      %v687 = vld [vmem:[%s6] sm:$0x1]
      %v688 = vld [vmem:[%s7] sm:$0x1]
      %v689 = vsel %vm500, %v686, 0.0
      %690 = vadd.xlane.f32.xlu0 %v689
      %v691 = vpop.xlane.xlu0 %690
      %v692 = vrcp.pop 32.0
      %v693 = vmul.f32 32.0, %v692
      %v694 = vsub.f32 1.0, %v693
      %v695 = vmul.f32 %v692, %v694
      %v696 = vadd.f32 %v692, %v695
      %vm697 = vweird.f32 %v692
      %v698 = vsel %vm697, %v692, %v696
      %v699 = vmul.f32 %v691, %v698
      %v700 = vsub.f32 %v686, %v699
      %v701 = vmul.f32 %v700, %v700
      %v702 = vsel %vm500, %v701, 0.0
      %703 = vadd.xlane.f32.xlu0 %v702
      %v704 = vpop.xlane.xlu0 %703
      %v705 = vmul.f32 %v704, %v698
      %v706 = vadd.f32 %v705, 1e-05
      %v707 = vrsqrt.pop %v706
      %v708 = vmul.f32 %v707, %v706
      %v709 = vmul.f32 %v708, %v707
      %v710 = vmul.f32 0.5, %v709
      %v711 = vsub.f32 1.5, %v710
      %v712 = vmul.f32 %v707, %v711
      %vm713 = vweird.f32 %v706
      %vm714 = vweird.f32 %v707
      %vm715 = vmor %vm713, %vm714
      %v716 = vsel %vm715, %v707, %v712
      %v717 = vmul.f32 %v700, %v716
      %v719 = vperm.slane %v687, 0
      %v721 = vmul.f32 %v717, %v719
      %v723 = vperm.slane %v688, 0
      %v725 = vadd.f32 %v721, %v723
      %v726 = vpack.c.bf16 %v725, %v725
      %v727 = vld [vmem:[%s8] sm:$0xf]
      %v728 = vld [vmem:[%s8 + $0x4] sm:$0xf]
      %v729 = vld [vmem:[%s8 + $0x8] sm:$0xf]
      %v730 = vld [vmem:[%s8 + $0xc] sm:$0xf]
      %v731 = vld [vmem:[%s9] sm:$0x1]
      %v733 = vperm.slane %v731, 0
      %v739 = vunpack.c.l.b16 %v727
      %v740 = vunpack.c.l.b16 %v728
      %v741 = vunpack.c.l.b16 %v729
      %v742 = vunpack.c.l.b16 %v730
      %v743 = vpack.c.b16 %v740, %v739
      %v744 = vpack.c.b16 %v742, %v741
      %v748 = vsel %vm500, %v726, 0
      %750 = vmatpush.bf16.msra.mxu0 0
      %751 = vmatpush.bf16.msra.mxu0 0
      %752 = vmatpush.bf16.msra.mxu0 0
      %753 = vmatpush.bf16.msra.mxu0 0
      %754 = vmatpush.bf16.msra.mxu0 0
      %755 = vmatpush.bf16.msra.mxu0 0
      %756 = vmatpush.bf16.msra.mxu0 %v744
      %757 = vmatpush.bf16.msra.mxu0 %v743
      %758 = vmatmul.bf16.gmra.mxu0 %v748
      %v759 = vpop.f32.mrf.mxu0
      %v760 = vadd.f32 %v733, %v759
      %v761 = vpop.f32.mrf.mxu0
      %762 = vdwg.mxu0
      %v763 = vmul.f32 %v760, %v760
      %v764 = vmul.f32 %v760, %v763
      %v765 = vmul.f32 %v764, 0.044715
      %v766 = vadd.f32 %v760, %v765
      %v767 = vmul.f32 %v766, 0.7978846
      %v768 = vtanh.pop %v767
      %v769 = vadd.f32 %v768, 1.0
      %v770 = vmul.f32 %v769, 0.5
      %v771 = vmul.f32 %v760, %v770
      %v772 = vpack.c.bf16 %v771, %v771
      %v773 = vld [vmem:[%s10] sm:$0xf]
      %v774 = vld [vmem:[%s10 + $0x4] sm:$0xf]
      %v775 = vld [vmem:[%s10 + $0x8] sm:$0xf]
      %v776 = vld [vmem:[%s10 + $0xc] sm:$0xf]
      %v777 = vld [vmem:[%s10 + $0x10] sm:$0xf]
      %v778 = vld [vmem:[%s10 + $0x14] sm:$0xf]
      %v779 = vld [vmem:[%s10 + $0x18] sm:$0xf]
      %v780 = vld [vmem:[%s10 + $0x1c] sm:$0xf]
      %v781 = vld [vmem:[%s11] sm:$0x1]
      %v783 = vperm.slane %v781, 0
      %v793 = vunpack.c.l.b16 %v773
      %v794 = vunpack.c.l.b16 %v774
      %v795 = vunpack.c.l.b16 %v775
      %v796 = vunpack.c.l.b16 %v776
      %v797 = vunpack.c.l.b16 %v777
      %v798 = vunpack.c.l.b16 %v778
      %v799 = vunpack.c.l.b16 %v779
      %v800 = vunpack.c.l.b16 %v780
      %v801 = vpack.c.b16 %v794, %v793
      %v802 = vpack.c.b16 %v796, %v795
      %v803 = vpack.c.b16 %v798, %v797
      %v804 = vpack.c.b16 %v800, %v799
      %vm809 = vcmask 523264
      %v811 = vsel %vm809, %v772, 0
      %813 = vmatpush.bf16.msra.mxu0 0
      %814 = vmatpush.bf16.msra.mxu0 0
      %815 = vmatpush.bf16.msra.mxu0 0
      %816 = vmatpush.bf16.msra.mxu0 0
      %817 = vmatpush.bf16.msra.mxu0 %v804
      %818 = vmatpush.bf16.msra.mxu0 %v803
      %819 = vmatpush.bf16.msra.mxu0 %v802
      %820 = vmatpush.bf16.msra.mxu0 %v801
      %821 = vmatmul.bf16.gmra.mxu0 %v811
      %v822 = vpop.f32.mrf.mxu0
      %v823 = vadd.f32 %v783, %v822
      %v824 = vpop.f32.mrf.mxu0
      %825 = vdwg.mxu0
      %v826 = vadd.f32 %v725, %v823
      %v827 = vld [vmem:[%s12] sm:$0x1]
      %v828 = vld [vmem:[%s13] sm:$0x1]
      %v829 = vsel %vm500, %v826, 0.0
      %830 = vadd.xlane.f32.xlu0 %v829
      %v831 = vpop.xlane.xlu0 %830
      %v832 = vmul.f32 %v831, %v698
      %v833 = vsub.f32 %v826, %v832
      %v834 = vmul.f32 %v833, %v833
      %v835 = vsel %vm500, %v834, 0.0
      %836 = vadd.xlane.f32.xlu0 %v835
      %v837 = vpop.xlane.xlu0 %836
      %v838 = vmul.f32 %v837, %v698
      %v839 = vadd.f32 %v838, 1e-05
      %v840 = vrsqrt.pop %v839
      %v841 = vmul.f32 %v840, %v839
      %v842 = vmul.f32 %v841, %v840
      %v843 = vmul.f32 0.5, %v842
      %v844 = vsub.f32 1.5, %v843
      %v845 = vmul.f32 %v840, %v844
      %vm846 = vweird.f32 %v839
      %vm847 = vweird.f32 %v840
      %vm848 = vmor %vm846, %vm847
      %v849 = vsel %vm848, %v840, %v845
      %v850 = vmul.f32 %v833, %v849
      %v852 = vperm.slane %v827, 0
      %v854 = vmul.f32 %v850, %v852
      %v856 = vperm.slane %v828, 0
      %v858 = vadd.f32 %v854, %v856
      %859 = vst.msk [vmem:[%s476] sm:$0xff] %vm500, %v858
      %p860 = scmp.lt.s32.totalorder %s25, 1
      %s861 = scalar_select %p860, %s25, 1
      %s862 = smul.addr %s861, 8
      %s863 = scalar_lea.vmem %s14, %s862
      // Predicated region
      $region77: #{trident_forward.5} parent=75 // pred_check
        %p864 = pneg %p347
      $region78: #{trident_forward.5} parent=75 // pred_check_branch
        %866 = sbr.rel (%p864) target = $region80
      $region79: #{trident_forward.5} parent=75 // pred_region
        _
      $region80: #{trident_forward.5} parent=75 // pred_fallthru
        _
    $region76: #{trident_forward.5} parent=5 // pred_fallthru
      _
    %p867 = scmp.le.s32.totalorder 2, %s20
    // Predicated region
    $region81: #{trident_forward.5} parent=5 // pred_check
      %p868 = pneg %p867
    $region82: #{trident_forward.5} parent=5 // pred_check_branch
      %870 = sbr.rel (%p868) target = $region84
    $region83: #{trident_forward.5} parent=5 // pred_region
      %s871 = ssub.s32 %s20, 2
      // Predicated region
      $region85: #{trident_forward.5} parent=83 // pred_check
        %p872 = pneg %p353
      $region86: #{trident_forward.5} parent=83 // pred_check_branch
        %874 = sbr.rel (%p872) target = $region88
      $region87: #{trident_forward.5} parent=83 // pred_region
        %p875 = scmp.lt.s32.totalorder %s26, 1
        %s876 = scalar_select %p875, %s26, 1
        %s877 = smul.addr %s876, 8
        %s878 = scalar_lea.vmem %s14, %s877
      $region88: #{trident_forward.5} parent=83 // pred_fallthru
        _
    $region84: #{trident_forward.5} parent=5 // pred_fallthru
      _
  $region6: #{trident_forward.5} parent=0 // loop_footer
    %s24 = sadd.s32 1, %s20
  $region7: #{trident_forward.5} parent=0 // loop_footer_branch
    %19 = sbr.rel target = $region3
  $region8: #{trident_forward.5} parent=0 // loop_exit
    _

</llo_original>
